<compile_context>
chip_gen: v7x
topology: tpu7x:2x2x1
jax: 0.10.0
libtpu: 0.0.40
codegen_flags: <defaults>
</compile_context>

<pallas_src>
import math
import functools

import jax
import jax.numpy as jnp
from jax.experimental import pallas as pl
from jax.experimental.pallas import tpu as pltpu


def _mha_kernel(xq_ref, xk_ref, xv_ref,
                wq_ref, wk_ref, wv_ref, wo_ref,
                bq_ref, bk_ref, bv_ref, bo_ref,
                o_ref, acc_ref,
                *, heads_per_group, d_k, batch_tile, seq_len, mxu_dtype):
    TB, S = batch_tile, seq_len
    rows = TB * S
    hg = heads_per_group
    g = pl.program_id(1)

    def mx(x):
        # Optional operand cast for bf16-native MXUs (v6e/v7x); accumulation
        # stays f32 via preferred_element_type in every dot below.
        return x if mxu_dtype is None else x.astype(mxu_dtype)

    xq = xq_ref[...]                                   # (rows, D)
    xk = xk_ref[...]
    xv = xv_ref[...]

    # Head-group projections over all rows of the batch tile:
    # (rows, D) @ (D, hg*d_k). Softmax scale is already folded into wq/bq.
    Qg = jnp.dot(mx(xq), mx(wq_ref[...]), preferred_element_type=jnp.float32) + bq_ref[...]
    Kg = jnp.dot(mx(xk), mx(wk_ref[...]), preferred_element_type=jnp.float32) + bk_ref[...]
    Vg = jnp.dot(mx(xv), mx(wv_ref[...]), preferred_element_type=jnp.float32) + bv_ref[...]

    # Leading-dim split only (layout preserving).
    Qb = Qg.reshape(TB, S, hg * d_k)
    Kb = Kg.reshape(TB, S, hg * d_k)
    Vb = Vg.reshape(TB, S, hg * d_k)

    wo = wo_ref[...]                                   # (hg*d_k, D)

    @pl.when(g == 0)
    def _():
        acc_ref[...] = jnp.zeros_like(acc_ref)

    # For realistic shapes (d_k a multiple of 128) hg == 1 and this loop has a
    # single iteration with full-lane-width "slices" (i.e. no lane slicing).
    for h in range(hg):
        lo = h * d_k
        Qh = Qb[:, :, lo:lo + d_k]                     # (TB, S, d_k)
        Kh = Kb[:, :, lo:lo + d_k]
        Vh = Vb[:, :, lo:lo + d_k]

        # scores[b, q, k] = sum_d Qh[b, q, d] * Kh[b, k, d]  (no explicit K.T)
        scores = jax.lax.dot_general(
            mx(Qh), mx(Kh),
            dimension_numbers=(((2,), (2,)), ((0,), (0,))),
            preferred_element_type=jnp.float32)        # (TB, S, S)

        # Max-subtracted softmax in f32 (matches the PyTorch reference).
        scores = scores - jnp.max(scores, axis=-1, keepdims=True)
        e = jnp.exp(scores)
        attn = e / jnp.sum(e, axis=-1, keepdims=True)  # exact divide (correctness)

        head = jax.lax.dot_general(
            mx(attn), mx(Vh),
            dimension_numbers=(((2,), (1,)), ((0,), (0,))),
            preferred_element_type=jnp.float32)        # (TB, S, d_k)

        # "concat heads then @ W_o" folded into per-head accumulation into the
        # f32 VMEM accumulator (resident across the head-group grid axis).
        acc_ref[...] += jnp.dot(
            mx(head.reshape(rows, d_k)), mx(wo[lo:lo + d_k, :]),
            preferred_element_type=jnp.float32)

    @pl.when(g == pl.num_programs(1) - 1)
    def _():
        o_ref[...] = (acc_ref[...] + bo_ref[...]).astype(o_ref.dtype)


def _head_group_size(nhead, d_k, lane=128):
    """Smallest divisor of nhead whose lane width hg*d_k is a multiple of 128
    (so weight BlockSpec tiles respect the (8, 128) tiling rule); falls back to
    all heads (full-width blocks) for toy head dims."""
    for cand in range(1, nhead + 1):
        if nhead % cand == 0 and (cand * d_k) % lane == 0:
            return cand
    return nhead


def _pick_batch_tile(B, S, D, group_width, itemsize, budget_bytes):
    """Largest batch tile whose per-step VMEM footprint fits the budget,
    preferring >= 2 grid steps (v7x has 2 TensorCores; multiple steps also let
    BlockSpec double-buffering overlap DMA with compute)."""
    def footprint(bt):
        rows = bt * S
        return (
            3 * 2 * rows * D * itemsize                                  # q/k/v blocks (x2 buffers)
            + 2 * rows * D * itemsize                                    # output block (x2 buffers)
            + (3 * 2 * D * group_width + 2 * group_width * D) * itemsize  # weight blocks
            + 4 * rows * group_width * 4                                 # f32 Q/K/V/head intermediates
            + bt * S * S * 4                                             # f32 scores (one head at a time)
            + rows * D * 4                                               # f32 accumulator scratch
        )

    divisors = [bt for bt in range(1, B + 1) if B % bt == 0]
    valid = [bt for bt in divisors if (bt * S) % 8 == 0 or bt == B]
    if not valid:
        valid = [B]
    fitting = [bt for bt in valid if footprint(bt) <= budget_bytes]
    if not fitting:
        return min(valid)
    multi_step = [bt for bt in fitting if B // bt >= 2]
    return max(multi_step) if multi_step else max(fitting)


def multi_head_attention(query, key, value, params, *, nhead,
                         batch_tile=None, mxu_dtype=None,
                         vmem_budget_bytes=24 * 1024 * 1024):
    """query/key/value: (B, S, D). params: dict of (in, out)-transposed weights
    wq/wk/wv/wo (D, D) and biases bq/bk/bv/bo (1, D)."""
    B, S, D = query.shape
    assert D % nhead == 0, "d_model must be divisible by nhead"
    d_k = D // nhead

    hg = _head_group_size(nhead, d_k)
    n_groups = nhead // hg
    group_width = hg * d_k

    itemsize = jnp.dtype(query.dtype).itemsize
    if batch_tile is None:
        batch_tile = _pick_batch_tile(B, S, D, group_width, itemsize, vmem_budget_bytes)
    assert B % batch_tile == 0
    rows = batch_tile * S

    # Fold the 1/(sqrt(d_k)+1e-8) softmax scale into the Q projection (trace time).
    scale = 1.0 / (math.sqrt(d_k) + 1e-8)
    wq = (params["wq"].astype(jnp.float32) * scale).astype(params["wq"].dtype)
    bq = (params["bq"].astype(jnp.float32) * scale).astype(params["bq"].dtype)

    # Lane-dense (B*S, D) activation slabs (free XLA reshape).
    q2 = query.reshape(B * S, D)
    k2 = key.reshape(B * S, D)
    v2 = value.reshape(B * S, D)

    kernel = functools.partial(
        _mha_kernel, heads_per_group=hg, d_k=d_k,
        batch_tile=batch_tile, seq_len=S, mxu_dtype=mxu_dtype)

    x_spec = pl.BlockSpec((rows, D), lambda i, g: (i, 0))
    wqkv_spec = pl.BlockSpec((D, group_width), lambda i, g: (0, g))
    wo_spec = pl.BlockSpec((group_width, D), lambda i, g: (g, 0))
    bqkv_spec = pl.BlockSpec((1, group_width), lambda i, g: (0, g))
    bo_spec = pl.BlockSpec((1, D), lambda i, g: (0, 0))
    # Output block index is constant across the head-group axis -> resident accumulator.
    o_spec = pl.BlockSpec((rows, D), lambda i, g: (i, 0))

    cost = pl.CostEstimate(
        flops=int(8 * B * S * D * D + 4 * B * S * S * D),
        transcendentals=int(B * nhead * S * S),
        bytes_accessed=int(itemsize * (4 * B * S * D + 4 * D * D + 4 * D)))

    out2 = pl.pallas_call(
        kernel,
        out_shape=jax.ShapeDtypeStruct((B * S, D), query.dtype),
        grid_spec=pltpu.PrefetchScalarGridSpec(
            num_scalar_prefetch=0,
            grid=(B // batch_tile, n_groups),
            in_specs=[x_spec, x_spec, x_spec,
                      wqkv_spec, wqkv_spec, wqkv_spec, wo_spec,
                      bqkv_spec, bqkv_spec, bqkv_spec, bo_spec],
            out_specs=o_spec,
            scratch_shapes=[pltpu.VMEM((rows, D), jnp.float32)]),
        compiler_params=pltpu.CompilerParams(
            dimension_semantics=("parallel", "arbitrary"),
            vmem_limit_bytes=int(min(2 * vmem_budget_bytes, 48 * 1024 * 1024))),
        cost_estimate=cost,
    )(q2, k2, v2,
      wq, params["wk"], params["wv"], params["wo"],
      bq, params["bk"], params["bv"], params["bo"])
    return out2.reshape(B, S, D)


def _xavier_uniform(key, out_dim, in_dim):
    # Matches torch.nn.init.xavier_uniform_ on a (out, in) Linear weight.
    limit = math.sqrt(6.0 / (in_dim + out_dim))
    return jax.random.uniform(key, (out_dim, in_dim), jnp.float32, -limit, limit)


def _reference_mha(query, key, value, params, *, nhead):
    """Pure-JAX reference mirroring the PyTorch forward (eval mode, mask=None)."""
    B, S, D = query.shape
    d_k = D // nhead
    Q = query @ params["wq"] + params["bq"]
    K = key @ params["wk"] + params["bk"]
    V = value @ params["wv"] + params["bv"]
    Q = Q.reshape(B, S, nhead, d_k).transpose(0, 2, 1, 3)
    K = K.reshape(B, S, nhead, d_k).transpose(0, 2, 1, 3)
    V = V.reshape(B, S, nhead, d_k).transpose(0, 2, 1, 3)
    scores = jnp.einsum("bhqd,bhkd->bhqk", Q, K) / (math.sqrt(d_k) + 1e-8)
    scores = scores - jnp.max(scores, axis=-1, keepdims=True)
    attn = jax.nn.softmax(scores, axis=-1)
    out = jnp.einsum("bhqk,bhkd->bhqd", attn, V)
    out = out.transpose(0, 2, 1, 3).reshape(B, S, D)
    return out @ params["wo"] + params["bo"]


if __name__ == "__main__":
    d_model, nhead = 32, 4
    B, S = 2, 8

    root = jax.random.PRNGKey(0)
    k_q, k_k, k_v, k_o, k_bq, k_bk, k_bv, k_bo, k_in0, k_in1, k_in2 = jax.random.split(root, 11)

    # PyTorch Linear weights are (out, in); pre-transpose to (in, out) for x @ W.
    # Non-zero biases exercise the bias / scale-folding path (the module
    # zero-inits them, but the forward must handle arbitrary trained values).
    params = {
        "wq": _xavier_uniform(k_q, d_model, d_model).T,
        "wk": _xavier_uniform(k_k, d_model, d_model).T,
        "wv": _xavier_uniform(k_v, d_model, d_model).T,
        "wo": _xavier_uniform(k_o, d_model, d_model).T,
        "bq": 0.1 * jax.random.normal(k_bq, (1, d_model), jnp.float32),
        "bk": 0.1 * jax.random.normal(k_bk, (1, d_model), jnp.float32),
        "bv": 0.1 * jax.random.normal(k_bv, (1, d_model), jnp.float32),
        "bo": 0.1 * jax.random.normal(k_bo, (1, d_model), jnp.float32),
    }

    query = jax.random.normal(k_in0, (B, S, d_model), jnp.float32)
    key = jax.random.normal(k_in1, (B, S, d_model), jnp.float32)
    value = jax.random.normal(k_in2, (B, S, d_model), jnp.float32)

    out = multi_head_attention(query, key, value, params, nhead=nhead)
    out = jax.block_until_ready(out)

    ref = _reference_mha(query, key, value, params, nhead=nhead)
    assert out.shape == (B, S, d_model)
    assert jnp.allclose(out, ref, atol=1e-3, rtol=1e-3), "Pallas output mismatch vs reference"

    print("KERNEL_OK")
</pallas_src>

<mosaic_0001>
module attributes {stable_mosaic.version = 11 : i64} {
  func.func @_mha_kernel(%arg0: i32, %arg1: i32, %arg2: memref<8x32xf32, #tpu.memory_space<vmem>>, %arg3: memref<8x32xf32, #tpu.memory_space<vmem>>, %arg4: memref<8x32xf32, #tpu.memory_space<vmem>>, %arg5: memref<32x32xf32, #tpu.memory_space<vmem>>, %arg6: memref<32x32xf32, #tpu.memory_space<vmem>>, %arg7: memref<32x32xf32, #tpu.memory_space<vmem>>, %arg8: memref<32x32xf32, #tpu.memory_space<vmem>>, %arg9: memref<1x32xf32, #tpu.memory_space<vmem>>, %arg10: memref<1x32xf32, #tpu.memory_space<vmem>>, %arg11: memref<1x32xf32, #tpu.memory_space<vmem>>, %arg12: memref<1x32xf32, #tpu.memory_space<vmem>>, %arg13: memref<8x32xf32, #tpu.memory_space<vmem>>, %arg14: memref<8x32xf32, #tpu.memory_space<vmem>>) attributes {dimension_semantics = [#tpu.dimension_semantics<parallel>, #tpu.dimension_semantics<arbitrary>], iteration_bounds = array<i64: 2, 1>, scalar_prefetch = 0 : i64, scratch_operands = 1 : i64, tpu.core_type = #tpu.core_type<tc>, window_params = [{transform_indices = @transform_0, window_bounds = array<i64: 8, 32>}, {transform_indices = @transform_1, window_bounds = array<i64: 8, 32>}, {transform_indices = @transform_2, window_bounds = array<i64: 8, 32>}, {transform_indices = @transform_3, window_bounds = array<i64: 32, 32>}, {transform_indices = @transform_4, window_bounds = array<i64: 32, 32>}, {transform_indices = @transform_5, window_bounds = array<i64: 32, 32>}, {transform_indices = @transform_6, window_bounds = array<i64: 32, 32>}, {transform_indices = @transform_7, window_bounds = array<i64: 1, 32>}, {transform_indices = @transform_8, window_bounds = array<i64: 1, 32>}, {transform_indices = @transform_9, window_bounds = array<i64: 1, 32>}, {pipeline_mode = #tpu.pipeline_mode<synchronous>, transform_indices = @transform_10, window_bounds = array<i64: 1, 32>}, {transform_indices = @transform_11, window_bounds = array<i64: 8, 32>}]} {
    %c0 = arith.constant 0 : index
    %c0_0 = arith.constant 0 : index
    %0 = vector.load %arg2[%c0, %c0_0] : memref<8x32xf32, #tpu.memory_space<vmem>>, vector<8x32xf32>
    %c0_1 = arith.constant 0 : index
    %c0_2 = arith.constant 0 : index
    %1 = vector.load %arg3[%c0_1, %c0_2] : memref<8x32xf32, #tpu.memory_space<vmem>>, vector<8x32xf32>
    %c0_3 = arith.constant 0 : index
    %c0_4 = arith.constant 0 : index
    %2 = vector.load %arg4[%c0_3, %c0_4] : memref<8x32xf32, #tpu.memory_space<vmem>>, vector<8x32xf32>
    %c0_5 = arith.constant 0 : index
    %c0_6 = arith.constant 0 : index
    %3 = vector.load %arg5[%c0_5, %c0_6] : memref<32x32xf32, #tpu.memory_space<vmem>>, vector<32x32xf32>
    %cst = arith.constant dense<0.000000e+00> : vector<8x32xf32>
    %4 = tpu.matmul %0, %3, %cst {dimension_numbers = #tpu.dot_dimension_numbers<[1], [0], [0], [1], [0, 0, 1, 1], [], []>} : vector<8x32xf32>, vector<32x32xf32>, vector<8x32xf32> -> vector<8x32xf32>
    %c0_7 = arith.constant 0 : index
    %c0_8 = arith.constant 0 : index
    %5 = vector.load %arg9[%c0_7, %c0_8] : memref<1x32xf32, #tpu.memory_space<vmem>>, vector<1x32xf32>
    %6 = vector.broadcast %5 : vector<1x32xf32> to vector<8x32xf32>
    %7 = arith.addf %4, %6 : vector<8x32xf32>
    %c0_9 = arith.constant 0 : index
    %c0_10 = arith.constant 0 : index
    %8 = vector.load %arg6[%c0_9, %c0_10] : memref<32x32xf32, #tpu.memory_space<vmem>>, vector<32x32xf32>
    %cst_11 = arith.constant dense<0.000000e+00> : vector<8x32xf32>
    %9 = tpu.matmul %1, %8, %cst_11 {dimension_numbers = #tpu.dot_dimension_numbers<[1], [0], [0], [1], [0, 0, 1, 1], [], []>} : vector<8x32xf32>, vector<32x32xf32>, vector<8x32xf32> -> vector<8x32xf32>
    %c0_12 = arith.constant 0 : index
    %c0_13 = arith.constant 0 : index
    %10 = vector.load %arg10[%c0_12, %c0_13] : memref<1x32xf32, #tpu.memory_space<vmem>>, vector<1x32xf32>
    %11 = vector.broadcast %10 : vector<1x32xf32> to vector<8x32xf32>
    %12 = arith.addf %9, %11 : vector<8x32xf32>
    %c0_14 = arith.constant 0 : index
    %c0_15 = arith.constant 0 : index
    %13 = vector.load %arg7[%c0_14, %c0_15] : memref<32x32xf32, #tpu.memory_space<vmem>>, vector<32x32xf32>
    %cst_16 = arith.constant dense<0.000000e+00> : vector<8x32xf32>
    %14 = tpu.matmul %2, %13, %cst_16 {dimension_numbers = #tpu.dot_dimension_numbers<[1], [0], [0], [1], [0, 0, 1, 1], [], []>} : vector<8x32xf32>, vector<32x32xf32>, vector<8x32xf32> -> vector<8x32xf32>
    %c0_17 = arith.constant 0 : index
    %c0_18 = arith.constant 0 : index
    %15 = vector.load %arg11[%c0_17, %c0_18] : memref<1x32xf32, #tpu.memory_space<vmem>>, vector<1x32xf32>
    %16 = vector.broadcast %15 : vector<1x32xf32> to vector<8x32xf32>
    %17 = arith.addf %14, %16 : vector<8x32xf32>
    %18 = vector.shape_cast %7 : vector<8x32xf32> to vector<1x8x32xf32>
    %19 = vector.shape_cast %12 : vector<8x32xf32> to vector<1x8x32xf32>
    %20 = vector.shape_cast %17 : vector<8x32xf32> to vector<1x8x32xf32>
    %c0_19 = arith.constant 0 : index
    %c0_20 = arith.constant 0 : index
    %21 = vector.load %arg8[%c0_19, %c0_20] : memref<32x32xf32, #tpu.memory_space<vmem>>, vector<32x32xf32>
    %c0_i32 = arith.constant 0 : i32
    %22 = arith.cmpi eq, %arg1, %c0_i32 : i32
    %23 = arith.extui %22 : i1 to i32
    %c0_i32_21 = arith.constant 0 : i32
    %24 = arith.cmpi ne, %23, %c0_i32_21 : i32
    scf.if %24 {
      %cst_60 = arith.constant 0.000000e+00 : f32
      %108 = vector.broadcast %cst_60 : f32 to vector<8x32xf32>
      %c0_61 = arith.constant 0 : index
      %c0_62 = arith.constant 0 : index
      %109 = vector.load %arg14[%c0_61, %c0_62] : memref<8x32xf32, #tpu.memory_space<vmem>>, vector<8x32xf32>
      tpu.vector_store %arg14[%c0_61, %c0_62], %108 {strides = array<i32>} : memref<8x32xf32, #tpu.memory_space<vmem>>, vector<8x32xf32>,
    } else {
    }
    %25 = vector.extract_strided_slice %18 {offsets = [0, 0, 0], sizes = [1, 8, 8], strides = [1, 1, 1]} : vector<1x8x32xf32> to vector<1x8x8xf32>
    %26 = vector.extract_strided_slice %19 {offsets = [0, 0, 0], sizes = [1, 8, 8], strides = [1, 1, 1]} : vector<1x8x32xf32> to vector<1x8x8xf32>
    %27 = vector.extract_strided_slice %20 {offsets = [0, 0, 0], sizes = [1, 8, 8], strides = [1, 1, 1]} : vector<1x8x32xf32> to vector<1x8x8xf32>
    %cst_22 = arith.constant dense<0.000000e+00> : vector<1x8x8xf32>
    %28 = tpu.matmul %25, %26, %cst_22 {dimension_numbers = #tpu.dot_dimension_numbers<[2], [2], [1], [1], [0, 0, 0, 1, 1, 1], [0], [0]>} : vector<1x8x8xf32>, vector<1x8x8xf32>, vector<1x8x8xf32> -> vector<1x8x8xf32>
    %cst_23 = arith.constant dense<0xFF800000> : vector<1x8xf32>
    %29 = vector.multi_reduction <maximumf>, %28, %cst_23 [2] : vector<1x8x8xf32> to vector<1x8xf32>
    %30 = vector.shape_cast %29 : vector<1x8xf32> to vector<1x8x1xf32>
    %31 = vector.broadcast %30 : vector<1x8x1xf32> to vector<1x8x8xf32>
    %32 = arith.subf %28, %31 : vector<1x8x8xf32>
    %33 = math.exp %32 : vector<1x8x8xf32>
    %cst_24 = arith.constant dense<0.000000e+00> : vector<1x8xf32>
    %34 = vector.multi_reduction <add>, %33, %cst_24 [2] : vector<1x8x8xf32> to vector<1x8xf32>
    %35 = vector.shape_cast %34 : vector<1x8xf32> to vector<1x8x1xf32>
    %36 = vector.broadcast %35 : vector<1x8x1xf32> to vector<1x8x8xf32>
    %37 = arith.divf %33, %36 : vector<1x8x8xf32>
    %cst_25 = arith.constant dense<0.000000e+00> : vector<1x8x8xf32>
    %38 = tpu.matmul %37, %27, %cst_25 {dimension_numbers = #tpu.dot_dimension_numbers<[2], [1], [1], [2], [0, 0, 0, 1, 1, 2], [0], [0]>} : vector<1x8x8xf32>, vector<1x8x8xf32>, vector<1x8x8xf32> -> vector<1x8x8xf32>
    %c0_26 = arith.constant 0 : index
    %c0_27 = arith.constant 0 : index
    %39 = vector.load %arg14[%c0_26, %c0_27] : memref<8x32xf32, #tpu.memory_space<vmem>>, vector<8x32xf32>
    %40 = vector.shape_cast %38 : vector<1x8x8xf32> to vector<8x8xf32>
    %41 = vector.extract_strided_slice %21 {offsets = [0, 0], sizes = [8, 32], strides = [1, 1]} : vector<32x32xf32> to vector<8x32xf32>
    %cst_28 = arith.constant dense<0.000000e+00> : vector<8x32xf32>
    %42 = tpu.matmul %40, %41, %cst_28 {dimension_numbers = #tpu.dot_dimension_numbers<[1], [0], [0], [1], [0, 0, 1, 1], [], []>} : vector<8x8xf32>, vector<8x32xf32>, vector<8x32xf32> -> vector<8x32xf32>
    %43 = arith.addf %39, %42 : vector<8x32xf32>
    %c0_29 = arith.constant 0 : index
    %c0_30 = arith.constant 0 : index
    %44 = vector.load %arg14[%c0_29, %c0_30] : memref<8x32xf32, #tpu.memory_space<vmem>>, vector<8x32xf32>
    tpu.vector_store %arg14[%c0_29, %c0_30], %43 {strides = array<i32>} : memref<8x32xf32, #tpu.memory_space<vmem>>, vector<8x32xf32>,
    %45 = vector.extract_strided_slice %18 {offsets = [0, 0, 8], sizes = [1, 8, 8], strides = [1, 1, 1]} : vector<1x8x32xf32> to vector<1x8x8xf32>
    %46 = vector.extract_strided_slice %19 {offsets = [0, 0, 8], sizes = [1, 8, 8], strides = [1, 1, 1]} : vector<1x8x32xf32> to vector<1x8x8xf32>
    %47 = vector.extract_strided_slice %20 {offsets = [0, 0, 8], sizes = [1, 8, 8], strides = [1, 1, 1]} : vector<1x8x32xf32> to vector<1x8x8xf32>
    %cst_31 = arith.constant dense<0.000000e+00> : vector<1x8x8xf32>
    %48 = tpu.matmul %45, %46, %cst_31 {dimension_numbers = #tpu.dot_dimension_numbers<[2], [2], [1], [1], [0, 0, 0, 1, 1, 1], [0], [0]>} : vector<1x8x8xf32>, vector<1x8x8xf32>, vector<1x8x8xf32> -> vector<1x8x8xf32>
    %cst_32 = arith.constant dense<0xFF800000> : vector<1x8xf32>
    %49 = vector.multi_reduction <maximumf>, %48, %cst_32 [2] : vector<1x8x8xf32> to vector<1x8xf32>
    %50 = vector.shape_cast %49 : vector<1x8xf32> to vector<1x8x1xf32>
    %51 = vector.broadcast %50 : vector<1x8x1xf32> to vector<1x8x8xf32>
    %52 = arith.subf %48, %51 : vector<1x8x8xf32>
    %53 = math.exp %52 : vector<1x8x8xf32>
    %cst_33 = arith.constant dense<0.000000e+00> : vector<1x8xf32>
    %54 = vector.multi_reduction <add>, %53, %cst_33 [2] : vector<1x8x8xf32> to vector<1x8xf32>
    %55 = vector.shape_cast %54 : vector<1x8xf32> to vector<1x8x1xf32>
    %56 = vector.broadcast %55 : vector<1x8x1xf32> to vector<1x8x8xf32>
    %57 = arith.divf %53, %56 : vector<1x8x8xf32>
    %cst_34 = arith.constant dense<0.000000e+00> : vector<1x8x8xf32>
    %58 = tpu.matmul %57, %47, %cst_34 {dimension_numbers = #tpu.dot_dimension_numbers<[2], [1], [1], [2], [0, 0, 0, 1, 1, 2], [0], [0]>} : vector<1x8x8xf32>, vector<1x8x8xf32>, vector<1x8x8xf32> -> vector<1x8x8xf32>
    %c0_35 = arith.constant 0 : index
    %c0_36 = arith.constant 0 : index
    %59 = vector.load %arg14[%c0_35, %c0_36] : memref<8x32xf32, #tpu.memory_space<vmem>>, vector<8x32xf32>
    %60 = vector.shape_cast %58 : vector<1x8x8xf32> to vector<8x8xf32>
    %61 = vector.extract_strided_slice %21 {offsets = [8, 0], sizes = [8, 32], strides = [1, 1]} : vector<32x32xf32> to vector<8x32xf32>
    %cst_37 = arith.constant dense<0.000000e+00> : vector<8x32xf32>
    %62 = tpu.matmul %60, %61, %cst_37 {dimension_numbers = #tpu.dot_dimension_numbers<[1], [0], [0], [1], [0, 0, 1, 1], [], []>} : vector<8x8xf32>, vector<8x32xf32>, vector<8x32xf32> -> vector<8x32xf32>
    %63 = arith.addf %59, %62 : vector<8x32xf32>
    %c0_38 = arith.constant 0 : index
    %c0_39 = arith.constant 0 : index
    %64 = vector.load %arg14[%c0_38, %c0_39] : memref<8x32xf32, #tpu.memory_space<vmem>>, vector<8x32xf32>
    tpu.vector_store %arg14[%c0_38, %c0_39], %63 {strides = array<i32>} : memref<8x32xf32, #tpu.memory_space<vmem>>, vector<8x32xf32>,
    %65 = vector.extract_strided_slice %18 {offsets = [0, 0, 16], sizes = [1, 8, 8], strides = [1, 1, 1]} : vector<1x8x32xf32> to vector<1x8x8xf32>
    %66 = vector.extract_strided_slice %19 {offsets = [0, 0, 16], sizes = [1, 8, 8], strides = [1, 1, 1]} : vector<1x8x32xf32> to vector<1x8x8xf32>
    %67 = vector.extract_strided_slice %20 {offsets = [0, 0, 16], sizes = [1, 8, 8], strides = [1, 1, 1]} : vector<1x8x32xf32> to vector<1x8x8xf32>
    %cst_40 = arith.constant dense<0.000000e+00> : vector<1x8x8xf32>
    %68 = tpu.matmul %65, %66, %cst_40 {dimension_numbers = #tpu.dot_dimension_numbers<[2], [2], [1], [1], [0, 0, 0, 1, 1, 1], [0], [0]>} : vector<1x8x8xf32>, vector<1x8x8xf32>, vector<1x8x8xf32> -> vector<1x8x8xf32>
    %cst_41 = arith.constant dense<0xFF800000> : vector<1x8xf32>
    %69 = vector.multi_reduction <maximumf>, %68, %cst_41 [2] : vector<1x8x8xf32> to vector<1x8xf32>
    %70 = vector.shape_cast %69 : vector<1x8xf32> to vector<1x8x1xf32>
    %71 = vector.broadcast %70 : vector<1x8x1xf32> to vector<1x8x8xf32>
    %72 = arith.subf %68, %71 : vector<1x8x8xf32>
    %73 = math.exp %72 : vector<1x8x8xf32>
    %cst_42 = arith.constant dense<0.000000e+00> : vector<1x8xf32>
    %74 = vector.multi_reduction <add>, %73, %cst_42 [2] : vector<1x8x8xf32> to vector<1x8xf32>
    %75 = vector.shape_cast %74 : vector<1x8xf32> to vector<1x8x1xf32>
    %76 = vector.broadcast %75 : vector<1x8x1xf32> to vector<1x8x8xf32>
    %77 = arith.divf %73, %76 : vector<1x8x8xf32>
    %cst_43 = arith.constant dense<0.000000e+00> : vector<1x8x8xf32>
    %78 = tpu.matmul %77, %67, %cst_43 {dimension_numbers = #tpu.dot_dimension_numbers<[2], [1], [1], [2], [0, 0, 0, 1, 1, 2], [0], [0]>} : vector<1x8x8xf32>, vector<1x8x8xf32>, vector<1x8x8xf32> -> vector<1x8x8xf32>
    %c0_44 = arith.constant 0 : index
    %c0_45 = arith.constant 0 : index
    %79 = vector.load %arg14[%c0_44, %c0_45] : memref<8x32xf32, #tpu.memory_space<vmem>>, vector<8x32xf32>
    %80 = vector.shape_cast %78 : vector<1x8x8xf32> to vector<8x8xf32>
    %81 = vector.extract_strided_slice %21 {offsets = [16, 0], sizes = [8, 32], strides = [1, 1]} : vector<32x32xf32> to vector<8x32xf32>
    %cst_46 = arith.constant dense<0.000000e+00> : vector<8x32xf32>
    %82 = tpu.matmul %80, %81, %cst_46 {dimension_numbers = #tpu.dot_dimension_numbers<[1], [0], [0], [1], [0, 0, 1, 1], [], []>} : vector<8x8xf32>, vector<8x32xf32>, vector<8x32xf32> -> vector<8x32xf32>
    %83 = arith.addf %79, %82 : vector<8x32xf32>
    %c0_47 = arith.constant 0 : index
    %c0_48 = arith.constant 0 : index
    %84 = vector.load %arg14[%c0_47, %c0_48] : memref<8x32xf32, #tpu.memory_space<vmem>>, vector<8x32xf32>
    tpu.vector_store %arg14[%c0_47, %c0_48], %83 {strides = array<i32>} : memref<8x32xf32, #tpu.memory_space<vmem>>, vector<8x32xf32>,
    %85 = vector.extract_strided_slice %18 {offsets = [0, 0, 24], sizes = [1, 8, 8], strides = [1, 1, 1]} : vector<1x8x32xf32> to vector<1x8x8xf32>
    %86 = vector.extract_strided_slice %19 {offsets = [0, 0, 24], sizes = [1, 8, 8], strides = [1, 1, 1]} : vector<1x8x32xf32> to vector<1x8x8xf32>
    %87 = vector.extract_strided_slice %20 {offsets = [0, 0, 24], sizes = [1, 8, 8], strides = [1, 1, 1]} : vector<1x8x32xf32> to vector<1x8x8xf32>
    %cst_49 = arith.constant dense<0.000000e+00> : vector<1x8x8xf32>
    %88 = tpu.matmul %85, %86, %cst_49 {dimension_numbers = #tpu.dot_dimension_numbers<[2], [2], [1], [1], [0, 0, 0, 1, 1, 1], [0], [0]>} : vector<1x8x8xf32>, vector<1x8x8xf32>, vector<1x8x8xf32> -> vector<1x8x8xf32>
    %cst_50 = arith.constant dense<0xFF800000> : vector<1x8xf32>
    %89 = vector.multi_reduction <maximumf>, %88, %cst_50 [2] : vector<1x8x8xf32> to vector<1x8xf32>
    %90 = vector.shape_cast %89 : vector<1x8xf32> to vector<1x8x1xf32>
    %91 = vector.broadcast %90 : vector<1x8x1xf32> to vector<1x8x8xf32>
    %92 = arith.subf %88, %91 : vector<1x8x8xf32>
    %93 = math.exp %92 : vector<1x8x8xf32>
    %cst_51 = arith.constant dense<0.000000e+00> : vector<1x8xf32>
    %94 = vector.multi_reduction <add>, %93, %cst_51 [2] : vector<1x8x8xf32> to vector<1x8xf32>
    %95 = vector.shape_cast %94 : vector<1x8xf32> to vector<1x8x1xf32>
    %96 = vector.broadcast %95 : vector<1x8x1xf32> to vector<1x8x8xf32>
    %97 = arith.divf %93, %96 : vector<1x8x8xf32>
    %cst_52 = arith.constant dense<0.000000e+00> : vector<1x8x8xf32>
    %98 = tpu.matmul %97, %87, %cst_52 {dimension_numbers = #tpu.dot_dimension_numbers<[2], [1], [1], [2], [0, 0, 0, 1, 1, 2], [0], [0]>} : vector<1x8x8xf32>, vector<1x8x8xf32>, vector<1x8x8xf32> -> vector<1x8x8xf32>
    %c0_53 = arith.constant 0 : index
    %c0_54 = arith.constant 0 : index
    %99 = vector.load %arg14[%c0_53, %c0_54] : memref<8x32xf32, #tpu.memory_space<vmem>>, vector<8x32xf32>
    %100 = vector.shape_cast %98 : vector<1x8x8xf32> to vector<8x8xf32>
    %101 = vector.extract_strided_slice %21 {offsets = [24, 0], sizes = [8, 32], strides = [1, 1]} : vector<32x32xf32> to vector<8x32xf32>
    %cst_55 = arith.constant dense<0.000000e+00> : vector<8x32xf32>
    %102 = tpu.matmul %100, %101, %cst_55 {dimension_numbers = #tpu.dot_dimension_numbers<[1], [0], [0], [1], [0, 0, 1, 1], [], []>} : vector<8x8xf32>, vector<8x32xf32>, vector<8x32xf32> -> vector<8x32xf32>
    %103 = arith.addf %99, %102 : vector<8x32xf32>
    %c0_56 = arith.constant 0 : index
    %c0_57 = arith.constant 0 : index
    %104 = vector.load %arg14[%c0_56, %c0_57] : memref<8x32xf32, #tpu.memory_space<vmem>>, vector<8x32xf32>
    tpu.vector_store %arg14[%c0_56, %c0_57], %103 {strides = array<i32>} : memref<8x32xf32, #tpu.memory_space<vmem>>, vector<8x32xf32>,
    %c0_i32_58 = arith.constant 0 : i32
    %105 = arith.cmpi eq, %arg1, %c0_i32_58 : i32
    %106 = arith.extui %105 : i1 to i32
    %c0_i32_59 = arith.constant 0 : i32
    %107 = arith.cmpi ne, %106, %c0_i32_59 : i32
    scf.if %107 {
      %c0_60 = arith.constant 0 : index
      %c0_61 = arith.constant 0 : index
      %108 = vector.load %arg14[%c0_60, %c0_61] : memref<8x32xf32, #tpu.memory_space<vmem>>, vector<8x32xf32>
      %c0_62 = arith.constant 0 : index
      %c0_63 = arith.constant 0 : index
      %109 = vector.load %arg12[%c0_62, %c0_63] : memref<1x32xf32, #tpu.memory_space<vmem>>, vector<1x32xf32>
      %110 = vector.broadcast %109 : vector<1x32xf32> to vector<8x32xf32>
      %111 = arith.addf %108, %110 : vector<8x32xf32>
      %c0_64 = arith.constant 0 : index
      %c0_65 = arith.constant 0 : index
      %112 = vector.load %arg13[%c0_64, %c0_65] : memref<8x32xf32, #tpu.memory_space<vmem>>, vector<8x32xf32>
      tpu.vector_store %arg13[%c0_64, %c0_65], %111 {strides = array<i32>} : memref<8x32xf32, #tpu.memory_space<vmem>>, vector<8x32xf32>,
    } else {
    }
    return
  }
  func.func @transform_0(%arg0: i32, %arg1: i32) -> (i32, i32) {
    %c0_i32 = arith.constant 0 : i32
    %c0_i32_0 = arith.constant 0 : i32
    return %arg0, %c0_i32 : i32, i32
  }
  func.func @transform_1(%arg0: i32, %arg1: i32) -> (i32, i32) {
    %c0_i32 = arith.constant 0 : i32
    %c0_i32_0 = arith.constant 0 : i32
    return %arg0, %c0_i32 : i32, i32
  }
  func.func @transform_2(%arg0: i32, %arg1: i32) -> (i32, i32) {
    %c0_i32 = arith.constant 0 : i32
    %c0_i32_0 = arith.constant 0 : i32
    return %arg0, %c0_i32 : i32, i32
  }
  func.func @transform_3(%arg0: i32, %arg1: i32) -> (i32, i32) {
    %c0_i32 = arith.constant 0 : i32
    %c0_i32_0 = arith.constant 0 : i32
    return %c0_i32, %arg1 : i32, i32
  }
  func.func @transform_4(%arg0: i32, %arg1: i32) -> (i32, i32) {
    %c0_i32 = arith.constant 0 : i32
    %c0_i32_0 = arith.constant 0 : i32
    return %c0_i32, %arg1 : i32, i32
  }
  func.func @transform_5(%arg0: i32, %arg1: i32) -> (i32, i32) {
    %c0_i32 = arith.constant 0 : i32
    %c0_i32_0 = arith.constant 0 : i32
    return %c0_i32, %arg1 : i32, i32
  }
  func.func @transform_6(%arg0: i32, %arg1: i32) -> (i32, i32) {
    %c0_i32 = arith.constant 0 : i32
    %c0_i32_0 = arith.constant 0 : i32
    return %arg1, %c0_i32 : i32, i32
  }
  func.func @transform_7(%arg0: i32, %arg1: i32) -> (i32, i32) {
    %c0_i32 = arith.constant 0 : i32
    %c0_i32_0 = arith.constant 0 : i32
    return %c0_i32, %arg1 : i32, i32
  }
  func.func @transform_8(%arg0: i32, %arg1: i32) -> (i32, i32) {
    %c0_i32 = arith.constant 0 : i32
    %c0_i32_0 = arith.constant 0 : i32
    return %c0_i32, %arg1 : i32, i32
  }
  func.func @transform_9(%arg0: i32, %arg1: i32) -> (i32, i32) {
    %c0_i32 = arith.constant 0 : i32
    %c0_i32_0 = arith.constant 0 : i32
    return %c0_i32, %arg1 : i32, i32
  }
  func.func @transform_10(%arg0: i32, %arg1: i32) -> (i32, i32) {
    %c0_i32 = arith.constant 0 : i32
    %c0_i32_0 = arith.constant 0 : i32
    %c0_i32_1 = arith.constant 0 : i32
    return %c0_i32, %c0_i32_0 : i32, i32
  }
  func.func @transform_11(%arg0: i32, %arg1: i32) -> (i32, i32) {
    %c0_i32 = arith.constant 0 : i32
    %c0_i32_0 = arith.constant 0 : i32
    return %arg0, %c0_i32 : i32, i32
  }
}

</mosaic_0001>

<llo_original>
// kernel: tpu_custom_call.1
$region0: #{tpu_custom_call.1}
  #allocation0 [shape = 'u32[]', space=smem, size = 0x4, offset = 0x4, fixed_abs, tag = 'smem constant byte address 0x4 - core index']
  #allocation1 [shape = 'u32[144,128]{1,0:T(1,128)}', space=vmem, size = 0x12000, scoped, tag = 'internal scratch']
  #allocation2 [shape = 'f32[8,32]{1,0:T(8,128)}', space=vmem, size = 0x1000, scoped, tag = 'scratch operand']
  %s0 = inlined_call_operand.hbm [shape: f32[16,32], index: 0, kind: input, shape index: {}]
  %s1 = inlined_call_operand.hbm [shape: f32[16,32], index: 1, kind: input, shape index: {}]
  %s2 = inlined_call_operand.hbm [shape: f32[16,32], index: 2, kind: input, shape index: {}]
  %s3 = inlined_call_operand.hbm [shape: f32[32,32], index: 3, kind: input, shape index: {}]
  %s4 = inlined_call_operand.hbm [shape: f32[32,32], index: 4, kind: input, shape index: {}]
  %s5 = inlined_call_operand.hbm [shape: f32[32,32], index: 5, kind: input, shape index: {}]
  %s6 = inlined_call_operand.hbm [shape: f32[32,32], index: 6, kind: input, shape index: {}]
  %s7 = inlined_call_operand.vmem [shape: f32[1,32], index: 7, kind: input, shape index: {}]
  %s8 = inlined_call_operand.vmem [shape: f32[1,32], index: 8, kind: input, shape index: {}]
  %s9 = inlined_call_operand.vmem [shape: f32[1,32], index: 9, kind: input, shape index: {}]
  %s10 = inlined_call_operand.vmem [shape: f32[1,32], index: 10, kind: input, shape index: {}]
  %s11 = inlined_call_operand.hbm [shape: f32[16,32], index: 11, kind: output, shape index: {}]
  %s12 = sld [smem:[#allocation0]]
  $region113: #{tpu_custom_call.1} parent=0
    _
  %s14 = ssub.s32 1, %s12
  %s15 = scalar_select 0, %s14, %s12
  $region1: #{tpu_custom_call.1} parent=0
    #allocation3 [shape = 'u8[8192]{0}', space=vmem, size = 0x2000, scoped, tag = 'input window, operand 0']
    #allocation4 [shape = 's32[2]{0}', space=sflag, size = 0x8, scoped, tag = 'scoped memory for tpu_custom_call.1']
    #allocation5 [shape = 's32[2]{0}', space=sflag, size = 0x8, scoped, tag = 'scoped memory for tpu_custom_call.1']
    #allocation6 [shape = 'u8[8192]{0}', space=vmem, size = 0x2000, scoped, tag = 'input window, operand 1']
    #allocation7 [shape = 's32[2]{0}', space=sflag, size = 0x8, scoped, tag = 'scoped memory for tpu_custom_call.1']
    #allocation8 [shape = 'u8[8192]{0}', space=vmem, size = 0x2000, scoped, tag = 'input window, operand 2']
    #allocation9 [shape = 'u8[16384]{0}', space=vmem, size = 0x4000, scoped, tag = 'input window, operand 3, single buffered']
    #allocation10 [shape = 's32[1]{0}', space=sflag, size = 0x4, scoped, tag = 'scoped memory for tpu_custom_call.1']
    #allocation11 [shape = 'u8[16384]{0}', space=vmem, size = 0x4000, scoped, tag = 'input window, operand 4, single buffered']
    #allocation12 [shape = 'u8[16384]{0}', space=vmem, size = 0x4000, scoped, tag = 'input window, operand 5, single buffered']
    #allocation13 [shape = 's32[1]{0}', space=sflag, size = 0x4, scoped, tag = 'scoped memory for tpu_custom_call.1']
    #allocation14 [shape = 'u8[16384]{0}', space=vmem, size = 0x4000, scoped, tag = 'input window, operand 6, single buffered']
    #allocation15 [shape = 'u8[8192]{0}', space=vmem, size = 0x2000, scoped, tag = 'output window, operand 0']
    %16 = vsyncpa [#allocation4], 0
    %s17 = scalar_lea.sflag [#allocation4], 1
    %18 = vsyncpa %s17, 0
    %19 = vsyncpa [#allocation7], 0
    %s20 = scalar_lea.sflag [#allocation7], 1
    %21 = vsyncpa %s20, 0
    %22 = vsyncpa [#allocation10], 0
    %23 = vsyncpa [#allocation13], 0
    %24 = vsyncpa [#allocation5], 0
    %s25 = scalar_lea.sflag [#allocation5], 1
    %26 = vsyncpa %s25, 0
    loop: start=0, step=1, limit=4
    $region2: #{tpu_custom_call.1} parent=1 // loop_pre_header
      _
    $region3: #{tpu_custom_call.1} parent=1 // loop_header
      %s28 = sphi 0, %s32
      %p29 = scmp.ge.s32.totalorder %s28, 4
      %s35 = sphi 0, %s47
      %s36 = sphi 0, %s43
      %s37 = sphi 0, %s35
      %s38 = sphi 0, %s36
      %s39 = sphi 0, %s37
      %s40 = sphi 0, %s38
      %s50 = sphi 0, %s52
      %s53 = sphi 0, %s50
      %s54 = sphi 0, %s53
      %s70 = sphi 0, %s54
      %s76 = sphi 0, %s78
      %s79 = sphi 0, %s76
      %s80 = sphi 0, %s79
      %s96 = sphi 0, %s80
      %s102 = sphi 0, %s104
      %s105 = sphi 0, %s102
      %s106 = sphi 0, %s105
      %s122 = sphi 0, %s106
      %s128 = sphi 0, %s130
      %s131 = sphi 0, %s128
      %s132 = sphi 0, %s131
      %s148 = sphi 0, %s132
      %s154 = sphi 0, %s156
      %s157 = sphi 0, %s154
      %s158 = sphi 0, %s157
      %s174 = sphi 0, %s158
      %s180 = sphi 0, %s182
      %s183 = sphi 0, %s180
      %s184 = sphi 0, %s183
      %s200 = sphi 0, %s184
      %s206 = sphi 0, %s208
      %s209 = sphi 0, %s206
      %s210 = sphi 0, %s209
      %s226 = sphi 0, %s210
      %s232 = sphi 0, %s234
      %s235 = sphi 0, %s232
      %s236 = sphi 0, %s235
      %s252 = sphi 0, %s236
      %s258 = sphi 0, %s260
      %s261 = sphi 0, %s258
      %s262 = sphi 0, %s261
      %s278 = sphi 0, %s262
      %s284 = sphi 0, %s286
      %s287 = sphi 0, %s284
      %s288 = sphi 0, %s287
      %s304 = sphi 0, %s288
      %s308 = sphi 0, %s308
      %s310 = sphi 0, %s308
      %s311 = sphi 0, %s310
      %s325 = sphi 0, %s311
      %s331 = sphi 0, %s333
      %s334 = sphi 0, %s331
      %s335 = sphi 0, %s334
      %s351 = sphi 0, %s335
    $region4: #{tpu_custom_call.1} parent=1 // loop_header_branch
      %31 = sbr.rel (%p29) target = $region8
    $region5: #{tpu_custom_call.1} parent=1 // loop_body
      %s33 = ssub.s32 %s28, 1
      %s34 = ssub.s32 %s28, 2
      %s41 = sadd.s32 1, %s36
      %p42 = scmp.ge.s32.totalorder %s41, 1
      %s43 = scalar_select %p42, 0, %s41
      %s44 = sadd.s32 1, %s35
      %s45 = scalar_select %p42, %s44, %s35
      %p46 = scmp.ge.s32.totalorder %s45, 2
      %s47 = scalar_select %p46, 0, %s45
      %s48 = ssub.s32 %s35, %s47
      %p49 = scmp.eq.s32.totalorder %s48, 0
      %s51 = sadd.s32 %s50, 1
      %s52 = scalar_select %p49, %s50, %s51
      %p55 = pneg %p49
      %p56 = scmp.eq.s32.totalorder %s28, 1
      %p57 = por %p55, %p56
      %p58 = scmp.ne.s32.totalorder %s50, %s53
      %p59 = scmp.eq.s32.totalorder %s28, 0
      %p60 = por %p58, %p59
      %p61 = scmp.ne.s32.totalorder %s50, %s53
      %p62 = scmp.eq.s32.totalorder %s33, 1
      %p63 = por %p61, %p62
      %p64 = scmp.ne.s32.totalorder %s53, %s54
      %p65 = scmp.eq.s32.totalorder %s33, 0
      %p66 = por %p64, %p65
      %p67 = scmp.ne.s32.totalorder %s53, %s54
      %p68 = scmp.eq.s32.totalorder %s34, 1
      %p69 = por %p67, %p68
      %p71 = scmp.ne.s32.totalorder %s54, %s70
      %p72 = scmp.eq.s32.totalorder %s34, 0
      %p73 = por %p71, %p72
      %s74 = ssub.s32 %s35, %s47
      %p75 = scmp.eq.s32.totalorder %s74, 0
      %s77 = sadd.s32 %s76, 1
      %s78 = scalar_select %p75, %s76, %s77
      %p81 = pneg %p75
      %p82 = scmp.eq.s32.totalorder %s28, 1
      %p83 = por %p81, %p82
      %p84 = scmp.ne.s32.totalorder %s76, %s79
      %p85 = scmp.eq.s32.totalorder %s28, 0
      %p86 = por %p84, %p85
      %p87 = scmp.ne.s32.totalorder %s76, %s79
      %p88 = scmp.eq.s32.totalorder %s33, 1
      %p89 = por %p87, %p88
      %p90 = scmp.ne.s32.totalorder %s79, %s80
      %p91 = scmp.eq.s32.totalorder %s33, 0
      %p92 = por %p90, %p91
      %p93 = scmp.ne.s32.totalorder %s79, %s80
      %p94 = scmp.eq.s32.totalorder %s34, 1
      %p95 = por %p93, %p94
      %p97 = scmp.ne.s32.totalorder %s80, %s96
      %p98 = scmp.eq.s32.totalorder %s34, 0
      %p99 = por %p97, %p98
      %s100 = ssub.s32 %s35, %s47
      %p101 = scmp.eq.s32.totalorder %s100, 0
      %s103 = sadd.s32 %s102, 1
      %s104 = scalar_select %p101, %s102, %s103
      %p107 = pneg %p101
      %p108 = scmp.eq.s32.totalorder %s28, 1
      %p109 = por %p107, %p108
      %p110 = scmp.ne.s32.totalorder %s102, %s105
      %p111 = scmp.eq.s32.totalorder %s28, 0
      %p112 = por %p110, %p111
      %p113 = scmp.ne.s32.totalorder %s102, %s105
      %p114 = scmp.eq.s32.totalorder %s33, 1
      %p115 = por %p113, %p114
      %p116 = scmp.ne.s32.totalorder %s105, %s106
      %p117 = scmp.eq.s32.totalorder %s33, 0
      %p118 = por %p116, %p117
      %p119 = scmp.ne.s32.totalorder %s105, %s106
      %p120 = scmp.eq.s32.totalorder %s34, 1
      %p121 = por %p119, %p120
      %p123 = scmp.ne.s32.totalorder %s106, %s122
      %p124 = scmp.eq.s32.totalorder %s34, 0
      %p125 = por %p123, %p124
      %s126 = ssub.s32 %s36, %s43
      %p127 = scmp.eq.s32.totalorder %s126, 0
      %s129 = sadd.s32 %s128, 1
      %s130 = scalar_select %p127, %s128, %s129
      %p133 = pneg %p127
      %p134 = scmp.eq.s32.totalorder %s28, 1
      %p135 = por %p133, %p134
      %p136 = scmp.ne.s32.totalorder %s128, %s131
      %p137 = scmp.eq.s32.totalorder %s28, 0
      %p138 = por %p136, %p137
      %p139 = scmp.ne.s32.totalorder %s128, %s131
      %p140 = scmp.eq.s32.totalorder %s33, 1
      %p141 = por %p139, %p140
      %p142 = scmp.ne.s32.totalorder %s131, %s132
      %p143 = scmp.eq.s32.totalorder %s33, 0
      %p144 = por %p142, %p143
      %p145 = scmp.ne.s32.totalorder %s131, %s132
      %p146 = scmp.eq.s32.totalorder %s34, 1
      %p147 = por %p145, %p146
      %p149 = scmp.ne.s32.totalorder %s132, %s148
      %p150 = scmp.eq.s32.totalorder %s34, 0
      %p151 = por %p149, %p150
      %s152 = ssub.s32 %s36, %s43
      %p153 = scmp.eq.s32.totalorder %s152, 0
      %s155 = sadd.s32 %s154, 1
      %s156 = scalar_select %p153, %s154, %s155
      %p159 = pneg %p153
      %p160 = scmp.eq.s32.totalorder %s28, 1
      %p161 = por %p159, %p160
      %p162 = scmp.ne.s32.totalorder %s154, %s157
      %p163 = scmp.eq.s32.totalorder %s28, 0
      %p164 = por %p162, %p163
      %p165 = scmp.ne.s32.totalorder %s154, %s157
      %p166 = scmp.eq.s32.totalorder %s33, 1
      %p167 = por %p165, %p166
      %p168 = scmp.ne.s32.totalorder %s157, %s158
      %p169 = scmp.eq.s32.totalorder %s33, 0
      %p170 = por %p168, %p169
      %p171 = scmp.ne.s32.totalorder %s157, %s158
      %p172 = scmp.eq.s32.totalorder %s34, 1
      %p173 = por %p171, %p172
      %p175 = scmp.ne.s32.totalorder %s158, %s174
      %p176 = scmp.eq.s32.totalorder %s34, 0
      %p177 = por %p175, %p176
      %s178 = ssub.s32 %s36, %s43
      %p179 = scmp.eq.s32.totalorder %s178, 0
      %s181 = sadd.s32 %s180, 1
      %s182 = scalar_select %p179, %s180, %s181
      %p185 = pneg %p179
      %p186 = scmp.eq.s32.totalorder %s28, 1
      %p187 = por %p185, %p186
      %p188 = scmp.ne.s32.totalorder %s180, %s183
      %p189 = scmp.eq.s32.totalorder %s28, 0
      %p190 = por %p188, %p189
      %p191 = scmp.ne.s32.totalorder %s180, %s183
      %p192 = scmp.eq.s32.totalorder %s33, 1
      %p193 = por %p191, %p192
      %p194 = scmp.ne.s32.totalorder %s183, %s184
      %p195 = scmp.eq.s32.totalorder %s33, 0
      %p196 = por %p194, %p195
      %p197 = scmp.ne.s32.totalorder %s183, %s184
      %p198 = scmp.eq.s32.totalorder %s34, 1
      %p199 = por %p197, %p198
      %p201 = scmp.ne.s32.totalorder %s184, %s200
      %p202 = scmp.eq.s32.totalorder %s34, 0
      %p203 = por %p201, %p202
      %s204 = ssub.s32 %s36, %s43
      %p205 = scmp.eq.s32.totalorder %s204, 0
      %s207 = sadd.s32 %s206, 1
      %s208 = scalar_select %p205, %s206, %s207
      %p211 = pneg %p205
      %p212 = scmp.eq.s32.totalorder %s28, 1
      %p213 = por %p211, %p212
      %p214 = scmp.ne.s32.totalorder %s206, %s209
      %p215 = scmp.eq.s32.totalorder %s28, 0
      %p216 = por %p214, %p215
      %p217 = scmp.ne.s32.totalorder %s206, %s209
      %p218 = scmp.eq.s32.totalorder %s33, 1
      %p219 = por %p217, %p218
      %p220 = scmp.ne.s32.totalorder %s209, %s210
      %p221 = scmp.eq.s32.totalorder %s33, 0
      %p222 = por %p220, %p221
      %p223 = scmp.ne.s32.totalorder %s209, %s210
      %p224 = scmp.eq.s32.totalorder %s34, 1
      %p225 = por %p223, %p224
      %p227 = scmp.ne.s32.totalorder %s210, %s226
      %p228 = scmp.eq.s32.totalorder %s34, 0
      %p229 = por %p227, %p228
      %s230 = ssub.s32 %s36, %s43
      %p231 = scmp.eq.s32.totalorder %s230, 0
      %s233 = sadd.s32 %s232, 1
      %s234 = scalar_select %p231, %s232, %s233
      %p237 = pneg %p231
      %p238 = scmp.eq.s32.totalorder %s28, 1
      %p239 = por %p237, %p238
      %p240 = scmp.ne.s32.totalorder %s232, %s235
      %p241 = scmp.eq.s32.totalorder %s28, 0
      %p242 = por %p240, %p241
      %p243 = scmp.ne.s32.totalorder %s232, %s235
      %p244 = scmp.eq.s32.totalorder %s33, 1
      %p245 = por %p243, %p244
      %p246 = scmp.ne.s32.totalorder %s235, %s236
      %p247 = scmp.eq.s32.totalorder %s33, 0
      %p248 = por %p246, %p247
      %p249 = scmp.ne.s32.totalorder %s235, %s236
      %p250 = scmp.eq.s32.totalorder %s34, 1
      %p251 = por %p249, %p250
      %p253 = scmp.ne.s32.totalorder %s236, %s252
      %p254 = scmp.eq.s32.totalorder %s34, 0
      %p255 = por %p253, %p254
      %s256 = ssub.s32 %s36, %s43
      %p257 = scmp.eq.s32.totalorder %s256, 0
      %s259 = sadd.s32 %s258, 1
      %s260 = scalar_select %p257, %s258, %s259
      %p263 = pneg %p257
      %p264 = scmp.eq.s32.totalorder %s28, 1
      %p265 = por %p263, %p264
      %p266 = scmp.ne.s32.totalorder %s258, %s261
      %p267 = scmp.eq.s32.totalorder %s28, 0
      %p268 = por %p266, %p267
      %p269 = scmp.ne.s32.totalorder %s258, %s261
      %p270 = scmp.eq.s32.totalorder %s33, 1
      %p271 = por %p269, %p270
      %p272 = scmp.ne.s32.totalorder %s261, %s262
      %p273 = scmp.eq.s32.totalorder %s33, 0
      %p274 = por %p272, %p273
      %p275 = scmp.ne.s32.totalorder %s261, %s262
      %p276 = scmp.eq.s32.totalorder %s34, 1
      %p277 = por %p275, %p276
      %p279 = scmp.ne.s32.totalorder %s262, %s278
      %p280 = scmp.eq.s32.totalorder %s34, 0
      %p281 = por %p279, %p280
      %s282 = ssub.s32 %s36, %s43
      %p283 = scmp.eq.s32.totalorder %s282, 0
      %s285 = sadd.s32 %s284, 1
      %s286 = scalar_select %p283, %s284, %s285
      %p289 = pneg %p283
      %p290 = scmp.eq.s32.totalorder %s28, 1
      %p291 = por %p289, %p290
      %p292 = scmp.ne.s32.totalorder %s284, %s287
      %p293 = scmp.eq.s32.totalorder %s28, 0
      %p294 = por %p292, %p293
      %p295 = scmp.ne.s32.totalorder %s284, %s287
      %p296 = scmp.eq.s32.totalorder %s33, 1
      %p297 = por %p295, %p296
      %p298 = scmp.ne.s32.totalorder %s287, %s288
      %p299 = scmp.eq.s32.totalorder %s33, 0
      %p300 = por %p298, %p299
      %p301 = scmp.ne.s32.totalorder %s287, %s288
      %p302 = scmp.eq.s32.totalorder %s34, 1
      %p303 = por %p301, %p302
      %p305 = scmp.ne.s32.totalorder %s288, %s304
      %p306 = scmp.eq.s32.totalorder %s34, 0
      %p307 = por %p305, %p306
      %s309 = sadd.s32 %s308, 1
      %p312 = scmp.eq.s32.totalorder %s28, 1
      %p313 = scmp.ne.s32.totalorder %s308, %s310
      %p314 = scmp.eq.s32.totalorder %s28, 0
      %p315 = por %p313, %p314
      %p316 = scmp.ne.s32.totalorder %s308, %s310
      %p317 = scmp.eq.s32.totalorder %s33, 1
      %p318 = por %p316, %p317
      %p319 = scmp.ne.s32.totalorder %s310, %s311
      %p320 = scmp.eq.s32.totalorder %s33, 0
      %p321 = por %p319, %p320
      %p322 = scmp.ne.s32.totalorder %s310, %s311
      %p323 = scmp.eq.s32.totalorder %s34, 1
      %p324 = por %p322, %p323
      %p326 = scmp.ne.s32.totalorder %s311, %s325
      %p327 = scmp.eq.s32.totalorder %s34, 0
      %p328 = por %p326, %p327
      %s329 = ssub.s32 %s35, %s47
      %p330 = scmp.eq.s32.totalorder %s329, 0
      %s332 = sadd.s32 %s331, 1
      %s333 = scalar_select %p330, %s331, %s332
      %p336 = pneg %p330
      %p337 = scmp.eq.s32.totalorder %s28, 1
      %p338 = por %p336, %p337
      %p339 = scmp.ne.s32.totalorder %s331, %s334
      %p340 = scmp.eq.s32.totalorder %s28, 0
      %p341 = por %p339, %p340
      %p342 = scmp.ne.s32.totalorder %s331, %s334
      %p343 = scmp.eq.s32.totalorder %s33, 1
      %p344 = por %p342, %p343
      %p345 = scmp.ne.s32.totalorder %s334, %s335
      %p346 = scmp.eq.s32.totalorder %s33, 0
      %p347 = por %p345, %p346
      %p348 = scmp.ne.s32.totalorder %s334, %s335
      %p349 = scmp.eq.s32.totalorder %s34, 1
      %p350 = por %p348, %p349
      %p352 = scmp.ne.s32.totalorder %s335, %s351
      %p353 = scmp.eq.s32.totalorder %s34, 0
      %p354 = por %p352, %p353
      %p355 = scmp.le.s32.totalorder 1, %s28
      %p356 = scmp.lt.s32.totalorder %s28, 3
      %p357 = pnand %p355, %p356
      %p358 = pneg %p357
      // Predicated region
      $region9: #{tpu_custom_call.1} parent=5 // pred_check
        _
      $region10: #{tpu_custom_call.1} parent=5 // pred_check_branch
        %360 = sbr.rel (%p357) target = $region12
      $region11: #{tpu_custom_call.1} parent=5 // pred_region
        %s361 = ssub.s32 %s28, 1
        // Predicated region
        $region13: #{tpu_custom_call.1} parent=11 // pred_check
          %p362 = pneg %p144
        $region14: #{tpu_custom_call.1} parent=11 // pred_check_branch
          %364 = sbr.rel (%p362) target = $region16
        $region15: #{tpu_custom_call.1} parent=11 // pred_region
          %s366 = ssub.s32 512, 512
          %367 = vsyncadd [#allocation10], %s366
          %s368 = smul.addr %s38, 128
          %s369 = scalar_lea.hbm %s3, %s368
          %s370 = sshll.u32 [#allocation9], 4
          %s371 = int_to_ptr.vmem [resolvable:$true] %s370
          %376 = dma.hbm_to_vmem [thread:$0]  %s369, 512, %s371, [#allocation10], 128, 128, 8
        $region16: #{tpu_custom_call.1} parent=11 // pred_fallthru
          _
        // Predicated region
        $region17: #{tpu_custom_call.1} parent=11 // pred_check
          %p377 = pneg %p170
        $region18: #{tpu_custom_call.1} parent=11 // pred_check_branch
          %379 = sbr.rel (%p377) target = $region20
        $region19: #{tpu_custom_call.1} parent=11 // pred_region
          %s381 = ssub.s32 512, 512
          %382 = vsyncadd [#allocation10], %s381
          %s383 = smul.addr %s38, 128
          %s384 = scalar_lea.hbm %s4, %s383
          %s385 = sshll.u32 [#allocation11], 4
          %s386 = int_to_ptr.vmem [resolvable:$true] %s385
          %391 = dma.hbm_to_vmem [thread:$0]  %s384, 512, %s386, [#allocation10], 128, 128, 8
        $region20: #{tpu_custom_call.1} parent=11 // pred_fallthru
          _
        // Predicated region
        $region21: #{tpu_custom_call.1} parent=11 // pred_check
          %p392 = pneg %p196
        $region22: #{tpu_custom_call.1} parent=11 // pred_check_branch
          %394 = sbr.rel (%p392) target = $region24
        $region23: #{tpu_custom_call.1} parent=11 // pred_region
          %s396 = ssub.s32 512, 512
          %397 = vsyncadd [#allocation13], %s396
          %s398 = smul.addr %s38, 128
          %s399 = scalar_lea.hbm %s5, %s398
          %s400 = sshll.u32 [#allocation12], 4
          %s401 = int_to_ptr.vmem [resolvable:$true] %s400
          %406 = dma.hbm_to_vmem [thread:$0]  %s399, 512, %s401, [#allocation13], 128, 128, 8
        $region24: #{tpu_custom_call.1} parent=11 // pred_fallthru
          _
        // Predicated region
        $region25: #{tpu_custom_call.1} parent=11 // pred_check
          %p407 = pneg %p222
        $region26: #{tpu_custom_call.1} parent=11 // pred_check_branch
          %409 = sbr.rel (%p407) target = $region28
        $region27: #{tpu_custom_call.1} parent=11 // pred_region
          %s410 = smul.u32 4, %s38
          %s412 = ssub.s32 512, 512
          %413 = vsyncadd [#allocation13], %s412
          %s414 = smul.addr %s410, 128
          %s415 = scalar_lea.hbm %s6, %s414
          %s416 = sshll.u32 [#allocation14], 4
          %s417 = int_to_ptr.vmem [resolvable:$true] %s416
          %422 = dma.hbm_to_vmem [thread:$0]  %s415, 512, %s417, [#allocation13], 128, 128, 8
        $region28: #{tpu_custom_call.1} parent=11 // pred_fallthru
          _
        // Predicated region
        $region29: #{tpu_custom_call.1} parent=11 // pred_check
          %p423 = pneg %p248
        $region30: #{tpu_custom_call.1} parent=11 // pred_check_branch
          %425 = sbr.rel (%p423) target = $region32
        $region31: #{tpu_custom_call.1} parent=11 // pred_region
          %p426 = scmp.lt.s32.totalorder %s38, 0
          %s427 = scalar_select %p426, %s38, 0
          %s428 = scalar_lea.vmem %s7, %s427
        $region32: #{tpu_custom_call.1} parent=11 // pred_fallthru
          _
        // Predicated region
        $region33: #{tpu_custom_call.1} parent=11 // pred_check
          %p429 = pneg %p274
        $region34: #{tpu_custom_call.1} parent=11 // pred_check_branch
          %431 = sbr.rel (%p429) target = $region36
        $region35: #{tpu_custom_call.1} parent=11 // pred_region
          %p432 = scmp.lt.s32.totalorder %s38, 0
          %s433 = scalar_select %p432, %s38, 0
          %s434 = scalar_lea.vmem %s8, %s433
        $region36: #{tpu_custom_call.1} parent=11 // pred_fallthru
          _
        // Predicated region
        $region37: #{tpu_custom_call.1} parent=11 // pred_check
          %p435 = pneg %p300
        $region38: #{tpu_custom_call.1} parent=11 // pred_check_branch
          %437 = sbr.rel (%p435) target = $region40
        $region39: #{tpu_custom_call.1} parent=11 // pred_region
          %p438 = scmp.lt.s32.totalorder %s38, 0
          %s439 = scalar_select %p438, %s38, 0
          %s440 = scalar_lea.vmem %s9, %s439
        $region40: #{tpu_custom_call.1} parent=11 // pred_fallthru
          _
        // Predicated region
        $region41: #{tpu_custom_call.1} parent=11 // pred_check
          %p441 = pneg %p321
        $region42: #{tpu_custom_call.1} parent=11 // pred_check_branch
          %443 = sbr.rel (%p441) target = $region44
        $region43: #{tpu_custom_call.1} parent=11 // pred_region
          _
        $region44: #{tpu_custom_call.1} parent=11 // pred_fallthru
          _
      $region12: #{tpu_custom_call.1} parent=5 // pred_fallthru
        _
      %p444 = scmp.lt.s32.totalorder %s28, 2
      // Predicated region
      $region45: #{tpu_custom_call.1} parent=5 // pred_check
        %p445 = pneg %p444
      $region46: #{tpu_custom_call.1} parent=5 // pred_check_branch
        %447 = sbr.rel (%p445) target = $region48
      $region47: #{tpu_custom_call.1} parent=5 // pred_region
        // Predicated region
        $region49: #{tpu_custom_call.1} parent=47 // pred_check
          %p448 = pneg %p60
        $region50: #{tpu_custom_call.1} parent=47 // pred_check_branch
          %450 = sbr.rel (%p448) target = $region52
        $region51: #{tpu_custom_call.1} parent=47 // pred_region
          %s451 = sand.u32 %s50, 1
          %s452 = scalar_lea.sflag [#allocation4], %s451
          %s453 = sand.u32 %s50, 1
          %s454 = smul.addr %s453, 8
          %s455 = scalar_lea.vmem [#allocation3], %s454
          %s457 = ssub.s32 128, 128
          %458 = vsyncadd %s452, %s457
          %s459 = smul.addr %s35, 128
          %s460 = scalar_lea.hbm %s0, %s459
          %s462 = sshll.u32 %s455, 4
          %s463 = int_to_ptr.vmem [resolvable:$true] %s462
          %465 = dma.hbm_to_vmem [thread:$0]  %s460, 128, %s463, %s452
        $region52: #{tpu_custom_call.1} parent=47 // pred_fallthru
          _
        // Predicated region
        $region53: #{tpu_custom_call.1} parent=47 // pred_check
          %p466 = pneg %p86
        $region54: #{tpu_custom_call.1} parent=47 // pred_check_branch
          %468 = sbr.rel (%p466) target = $region56
        $region55: #{tpu_custom_call.1} parent=47 // pred_region
          %s469 = sand.u32 %s28, 1
          %s470 = scalar_lea.sflag [#allocation7], %s469
          %s471 = sand.u32 %s76, 1
          %s472 = smul.addr %s471, 8
          %s473 = scalar_lea.vmem [#allocation6], %s472
          %s475 = ssub.s32 128, 128
          %476 = vsyncadd %s470, %s475
          %s477 = smul.addr %s35, 128
          %s478 = scalar_lea.hbm %s1, %s477
          %s480 = sshll.u32 %s473, 4
          %s481 = int_to_ptr.vmem [resolvable:$true] %s480
          %483 = dma.hbm_to_vmem [thread:$0]  %s478, 128, %s481, %s470
        $region56: #{tpu_custom_call.1} parent=47 // pred_fallthru
          _
        // Predicated region
        $region57: #{tpu_custom_call.1} parent=47 // pred_check
          %p484 = pneg %p112
        $region58: #{tpu_custom_call.1} parent=47 // pred_check_branch
          %486 = sbr.rel (%p484) target = $region60
        $region59: #{tpu_custom_call.1} parent=47 // pred_region
          %s487 = sand.u32 %s28, 1
          %s488 = scalar_lea.sflag [#allocation7], %s487
          %s489 = sand.u32 %s102, 1
          %s490 = smul.addr %s489, 8
          %s491 = scalar_lea.vmem [#allocation8], %s490
          %s493 = ssub.s32 128, 128
          %494 = vsyncadd %s488, %s493
          %s495 = smul.addr %s35, 128
          %s496 = scalar_lea.hbm %s2, %s495
          %s498 = sshll.u32 %s491, 4
          %s499 = int_to_ptr.vmem [resolvable:$true] %s498
          %501 = dma.hbm_to_vmem [thread:$0]  %s496, 128, %s499, %s488
        $region60: #{tpu_custom_call.1} parent=47 // pred_fallthru
          _
      $region48: #{tpu_custom_call.1} parent=5 // pred_fallthru
        _
      %p502 = scmp.le.s32.totalorder 1, %s28
      %p503 = scmp.lt.s32.totalorder %s28, 3
      %p504 = pnand %p502, %p503
      %p505 = pneg %p504
      // Predicated region
      $region61: #{tpu_custom_call.1} parent=5 // pred_check
        _
      $region62: #{tpu_custom_call.1} parent=5 // pred_check_branch
        %507 = sbr.rel (%p504) target = $region64
      $region63: #{tpu_custom_call.1} parent=5 // pred_region
        %s508 = ssub.s32 %s28, 1
        %s509 = sand.u32 %s53, 1
        %s510 = scalar_lea.sflag [#allocation4], %s509
        %s511 = sand.u32 %s53, 1
        %s512 = smul.addr %s511, 8
        %s513 = scalar_lea.vmem [#allocation3], %s512
        // Predicated region
        $region65: #{tpu_custom_call.1} parent=63 // pred_check
          %p514 = pneg %p66
        $region66: #{tpu_custom_call.1} parent=63 // pred_check_branch
          %516 = sbr.rel (%p514) target = $region68
        $region67: #{tpu_custom_call.1} parent=63 // pred_region
          %517 = dma.done %s510, 128
        $region68: #{tpu_custom_call.1} parent=63 // pred_fallthru
          _
        %s518 = sand.u32 %s33, 1
        %s519 = scalar_lea.sflag [#allocation7], %s518
        %s520 = sand.u32 %s79, 1
        %s521 = smul.addr %s520, 8
        %s522 = scalar_lea.vmem [#allocation6], %s521
        // Predicated region
        $region69: #{tpu_custom_call.1} parent=63 // pred_check
          %p523 = pneg %p92
        $region70: #{tpu_custom_call.1} parent=63 // pred_check_branch
          %525 = sbr.rel (%p523) target = $region72
        $region71: #{tpu_custom_call.1} parent=63 // pred_region
          %526 = dma.done %s519, 128
        $region72: #{tpu_custom_call.1} parent=63 // pred_fallthru
          _
        %s527 = sand.u32 %s33, 1
        %s528 = scalar_lea.sflag [#allocation7], %s527
        %s529 = sand.u32 %s105, 1
        %s530 = smul.addr %s529, 8
        %s531 = scalar_lea.vmem [#allocation8], %s530
        // Predicated region
        $region73: #{tpu_custom_call.1} parent=63 // pred_check
          %p532 = pneg %p118
        $region74: #{tpu_custom_call.1} parent=63 // pred_check_branch
          %534 = sbr.rel (%p532) target = $region76
        $region75: #{tpu_custom_call.1} parent=63 // pred_region
          %535 = dma.done %s528, 128
        $region76: #{tpu_custom_call.1} parent=63 // pred_fallthru
          _
        // Predicated region
        $region77: #{tpu_custom_call.1} parent=63 // pred_check
          %p536 = pneg %p144
        $region78: #{tpu_custom_call.1} parent=63 // pred_check_branch
          %538 = sbr.rel (%p536) target = $region80
        $region79: #{tpu_custom_call.1} parent=63 // pred_region
          %539 = dma.done [#allocation10], 512
        $region80: #{tpu_custom_call.1} parent=63 // pred_fallthru
          _
        // Predicated region
        $region81: #{tpu_custom_call.1} parent=63 // pred_check
          %p540 = pneg %p170
        $region82: #{tpu_custom_call.1} parent=63 // pred_check_branch
          %542 = sbr.rel (%p540) target = $region84
        $region83: #{tpu_custom_call.1} parent=63 // pred_region
          %543 = dma.done [#allocation10], 512
        $region84: #{tpu_custom_call.1} parent=63 // pred_fallthru
          _
        // Predicated region
        $region85: #{tpu_custom_call.1} parent=63 // pred_check
          %p544 = pneg %p196
        $region86: #{tpu_custom_call.1} parent=63 // pred_check_branch
          %546 = sbr.rel (%p544) target = $region88
        $region87: #{tpu_custom_call.1} parent=63 // pred_region
          %547 = dma.done [#allocation13], 512
        $region88: #{tpu_custom_call.1} parent=63 // pred_fallthru
          _
        // Predicated region
        $region89: #{tpu_custom_call.1} parent=63 // pred_check
          %p548 = pneg %p222
        $region90: #{tpu_custom_call.1} parent=63 // pred_check_branch
          %550 = sbr.rel (%p548) target = $region92
        $region91: #{tpu_custom_call.1} parent=63 // pred_region
          %551 = dma.done [#allocation13], 512
        $region92: #{tpu_custom_call.1} parent=63 // pred_fallthru
          _
        %s552 = sand.u32 %s53, 1
        %s553 = scalar_lea.sflag [#allocation4], %s552
        %s554 = sand.u32 %s53, 1
        %s555 = smul.addr %s554, 8
        %s556 = scalar_lea.vmem [#allocation3], %s555
        %p557 = pneg %p66
        %p558 = pneg %p63
        %s559 = sand.u32 %s33, 1
        %s560 = scalar_lea.sflag [#allocation7], %s559
        %s561 = sand.u32 %s79, 1
        %s562 = smul.addr %s561, 8
        %s563 = scalar_lea.vmem [#allocation6], %s562
        %p564 = pneg %p92
        %p565 = pneg %p89
        %s566 = sand.u32 %s33, 1
        %s567 = scalar_lea.sflag [#allocation7], %s566
        %s568 = sand.u32 %s105, 1
        %s569 = smul.addr %s568, 8
        %s570 = scalar_lea.vmem [#allocation8], %s569
        %p571 = pneg %p118
        %p572 = pneg %p115
        %p573 = pneg %p144
        %p574 = pneg %p141
        %p575 = pneg %p170
        %p576 = pneg %p167
        %p577 = pneg %p196
        %p578 = pneg %p193
        %p579 = pneg %p222
        %p580 = pneg %p219
        %p581 = scmp.lt.s32.totalorder %s38, 0
        %s582 = scalar_select %p581, %s38, 0
        %s583 = scalar_lea.vmem %s7, %s582
        %p584 = pneg %p248
        %p585 = pneg %p245
        %p586 = scmp.lt.s32.totalorder %s38, 0
        %s587 = scalar_select %p586, %s38, 0
        %s588 = scalar_lea.vmem %s8, %s587
        %p589 = pneg %p274
        %p590 = pneg %p271
        %p591 = scmp.lt.s32.totalorder %s38, 0
        %s592 = scalar_select %p591, %s38, 0
        %s593 = scalar_lea.vmem %s9, %s592
        %p594 = pneg %p300
        %p595 = pneg %p297
        %p596 = pneg %p321
        %p597 = pneg %p318
        %p598 = pneg %p347
        %p599 = pneg %p344
        %s600 = sand.u32 %s334, 1
        %s601 = scalar_lea.sflag [#allocation5], %s600
        %s602 = sand.u32 %s334, 1
        %s603 = smul.addr %s602, 8
        %s604 = scalar_lea.vmem [#allocation15], %s603
        %s605 = smul.u32 4, %s38
        %p606 = scmp.lt.s32.totalorder %s38, 0
        %s607 = scalar_select %p606, %s38, 0
        %s608 = scalar_lea.vmem %s7, %s607
        %p609 = scmp.lt.s32.totalorder %s38, 0
        %s610 = scalar_select %p609, %s38, 0
        %s611 = scalar_lea.vmem %s8, %s610
        %p612 = scmp.lt.s32.totalorder %s38, 0
        %s613 = scalar_select %p612, %s38, 0
        %s614 = scalar_lea.vmem %s9, %s613
        %v615 = vld [vmem:[%s513] sm:$0xff]
        %v616 = vld [vmem:[%s522] sm:$0xff]
        %v617 = vld [vmem:[%s531] sm:$0xff]
        %v618 = vld [vmem:[#allocation9] sm:$0xff]
        %v619 = vld [vmem:[#allocation9 + $0x8] sm:$0xff]
        %v620 = vld [vmem:[#allocation9 + $0x10] sm:$0xff]
        %v621 = vld [vmem:[#allocation9 + $0x18] sm:$0xff]
        %v622 = vld [vmem:[%s608] sm:$0x1]
        %v624 = vlaneseq
        %v625 = vshrl.u32 %v624, 7
        %v626 = vsub.s32 0, %v625
        %v627 = vrot.slane %v622, %v626
        %vm629 = vcmask 261120
        %v631 = vsel %vm629, %v615, 0
        %633 = vmatprep.subr.mxu0 0.0
        %634 = vmatpush1.msra.mxu0 %v618
        %635 = vmatprep.subr.mxu0 0.0
        %636 = vmatpush1.msra.mxu0 %v619
        %637 = vmatprep.subr.mxu0 0.0
        %638 = vmatpush1.msra.mxu0 %v620
        %639 = vmatprep.subr.mxu0 0.0
        %640 = vmatpush1.msra.mxu0 %v621
        %641 = vmatprep.subr.mxu0 0.0
        %642 = vmatpush1.msra.mxu0 0.0
        %643 = vmatprep.subr.mxu0 0.0
        %644 = vmatpush1.msra.mxu0 0.0
        %645 = vmatprep.subr.mxu0 0.0
        %646 = vmatpush1.msra.mxu0 0.0
        %647 = vmatprep.subr.mxu0 0.0
        %648 = vmatpush1.msra.mxu0 0.0
        %649 = vmatprep.subr.mxu0 0.0
        %650 = vmatpush1.msra.mxu0 0.0
        %651 = vmatprep.subr.mxu0 0.0
        %652 = vmatpush1.msra.mxu0 0.0
        %653 = vmatprep.subr.mxu0 0.0
        %654 = vmatpush1.msra.mxu0 0.0
        %655 = vmatprep.subr.mxu0 0.0
        %656 = vmatpush1.msra.mxu0 0.0
        %657 = vmatprep.subr.mxu0 0.0
        %658 = vmatpush1.msra.mxu0 0.0
        %659 = vmatprep.subr.mxu0 0.0
        %660 = vmatpush1.msra.mxu0 0.0
        %661 = vmatprep.subr.mxu0 0.0
        %662 = vmatpush1.msra.mxu0 0.0
        %663 = vmatprep.subr.mxu0 0.0
        %664 = vmatpush1.msra.mxu0 0.0
        %665 = vmatprep.subr.mxu0 0.0
        %666 = vmatpush1.msra.mxu0 0.0
        %667 = vmatprep.subr.mxu0 0.0
        %668 = vmatpush1.msra.mxu0 0.0
        %669 = vmatprep.subr.mxu0 0.0
        %670 = vmatpush1.msra.mxu0 0.0
        %671 = vmatprep.subr.mxu0 0.0
        %672 = vmatpush1.msra.mxu0 0.0
        %673 = vmatprep.subr.mxu0 0.0
        %674 = vmatpush1.msra.mxu0 0.0
        %675 = vmatprep.subr.mxu0 0.0
        %676 = vmatpush1.msra.mxu0 0.0
        %677 = vmatprep.subr.mxu0 0.0
        %678 = vmatpush1.msra.mxu0 0.0
        %679 = vmatprep.subr.mxu0 0.0
        %680 = vmatpush1.msra.mxu0 0.0
        %681 = vmatprep.subr.mxu0 0.0
        %682 = vmatpush1.msra.mxu0 0.0
        %683 = vmatprep.subr.mxu0 0.0
        %684 = vmatpush1.msra.mxu0 0.0
        %685 = vmatprep.subr.mxu0 0.0
        %686 = vmatpush1.msra.mxu0 0.0
        %687 = vmatprep.subr.mxu0 0.0
        %688 = vmatpush1.msra.mxu0 0.0
        %689 = vmatprep.subr.mxu0 0.0
        %690 = vmatpush1.msra.mxu0 0.0
        %691 = vmatprep.subr.mxu0 0.0
        %692 = vmatpush1.msra.mxu0 0.0
        %693 = vmatprep.subr.mxu0 0.0
        %694 = vmatpush1.msra.mxu0 0.0
        %695 = vmatprep.subr.mxu0 0.0
        %696 = vmatpush1.msra.mxu0 0.0
        %697 = vmatprep.mubr.f32.mxu0 0.0
        %698 = vmatmul.mubr.f32.gmra.mrb[0].mxu0 %v631
        %v699 = vpop.f32.mrb[0].mxu0
        %v700 = vadd.f32 %v627, %v699
        %v701 = vpop.f32.mrb[0].mxu0
        %702 = vdwg.mxu0
        %v703 = vld [vmem:[#allocation11] sm:$0xff]
        %v704 = vld [vmem:[#allocation11 + $0x8] sm:$0xff]
        %v705 = vld [vmem:[#allocation11 + $0x10] sm:$0xff]
        %v706 = vld [vmem:[#allocation11 + $0x18] sm:$0xff]
        %v707 = vld [vmem:[%s611] sm:$0x1]
        %v709 = vlaneseq
        %v710 = vshrl.u32 %v709, 7
        %v711 = vsub.s32 0, %v710
        %v712 = vrot.slane %v707, %v711
        %v715 = vsel %vm629, %v616, 0
        %717 = vmatprep.subr.mxu0 0.0
        %718 = vmatpush1.msra.mxu0 %v703
        %719 = vmatprep.subr.mxu0 0.0
        %720 = vmatpush1.msra.mxu0 %v704
        %721 = vmatprep.subr.mxu0 0.0
        %722 = vmatpush1.msra.mxu0 %v705
        %723 = vmatprep.subr.mxu0 0.0
        %724 = vmatpush1.msra.mxu0 %v706
        %725 = vmatprep.subr.mxu0 0.0
        %726 = vmatpush1.msra.mxu0 0.0
        %727 = vmatprep.subr.mxu0 0.0
        %728 = vmatpush1.msra.mxu0 0.0
        %729 = vmatprep.subr.mxu0 0.0
        %730 = vmatpush1.msra.mxu0 0.0
        %731 = vmatprep.subr.mxu0 0.0
        %732 = vmatpush1.msra.mxu0 0.0
        %733 = vmatprep.subr.mxu0 0.0
        %734 = vmatpush1.msra.mxu0 0.0
        %735 = vmatprep.subr.mxu0 0.0
        %736 = vmatpush1.msra.mxu0 0.0
        %737 = vmatprep.subr.mxu0 0.0
        %738 = vmatpush1.msra.mxu0 0.0
        %739 = vmatprep.subr.mxu0 0.0
        %740 = vmatpush1.msra.mxu0 0.0
        %741 = vmatprep.subr.mxu0 0.0
        %742 = vmatpush1.msra.mxu0 0.0
        %743 = vmatprep.subr.mxu0 0.0
        %744 = vmatpush1.msra.mxu0 0.0
        %745 = vmatprep.subr.mxu0 0.0
        %746 = vmatpush1.msra.mxu0 0.0
        %747 = vmatprep.subr.mxu0 0.0
        %748 = vmatpush1.msra.mxu0 0.0
        %749 = vmatprep.subr.mxu0 0.0
        %750 = vmatpush1.msra.mxu0 0.0
        %751 = vmatprep.subr.mxu0 0.0
        %752 = vmatpush1.msra.mxu0 0.0
        %753 = vmatprep.subr.mxu0 0.0
        %754 = vmatpush1.msra.mxu0 0.0
        %755 = vmatprep.subr.mxu0 0.0
        %756 = vmatpush1.msra.mxu0 0.0
        %757 = vmatprep.subr.mxu0 0.0
        %758 = vmatpush1.msra.mxu0 0.0
        %759 = vmatprep.subr.mxu0 0.0
        %760 = vmatpush1.msra.mxu0 0.0
        %761 = vmatprep.subr.mxu0 0.0
        %762 = vmatpush1.msra.mxu0 0.0
        %763 = vmatprep.subr.mxu0 0.0
        %764 = vmatpush1.msra.mxu0 0.0
        %765 = vmatprep.subr.mxu0 0.0
        %766 = vmatpush1.msra.mxu0 0.0
        %767 = vmatprep.subr.mxu0 0.0
        %768 = vmatpush1.msra.mxu0 0.0
        %769 = vmatprep.subr.mxu0 0.0
        %770 = vmatpush1.msra.mxu0 0.0
        %771 = vmatprep.subr.mxu0 0.0
        %772 = vmatpush1.msra.mxu0 0.0
        %773 = vmatprep.subr.mxu0 0.0
        %774 = vmatpush1.msra.mxu0 0.0
        %775 = vmatprep.subr.mxu0 0.0
        %776 = vmatpush1.msra.mxu0 0.0
        %777 = vmatprep.subr.mxu0 0.0
        %778 = vmatpush1.msra.mxu0 0.0
        %779 = vmatprep.subr.mxu0 0.0
        %780 = vmatpush1.msra.mxu0 0.0
        %781 = vmatprep.mubr.f32.mxu0 0.0
        %782 = vmatmul.mubr.f32.gmra.mrb[0].mxu0 %v715
        %v783 = vpop.f32.mrb[0].mxu0
        %v784 = vadd.f32 %v712, %v783
        %v785 = vpop.f32.mrb[0].mxu0
        %786 = vdwg.mxu0
        %v787 = vld [vmem:[#allocation12] sm:$0xff]
        %v788 = vld [vmem:[#allocation12 + $0x8] sm:$0xff]
        %v789 = vld [vmem:[#allocation12 + $0x10] sm:$0xff]
        %v790 = vld [vmem:[#allocation12 + $0x18] sm:$0xff]
        %v791 = vld [vmem:[%s614] sm:$0x1]
        %v793 = vlaneseq
        %v794 = vshrl.u32 %v793, 7
        %v795 = vsub.s32 0, %v794
        %v796 = vrot.slane %v791, %v795
        %v799 = vsel %vm629, %v617, 0
        %801 = vmatprep.subr.mxu0 0.0
        %802 = vmatpush1.msra.mxu0 %v787
        %803 = vmatprep.subr.mxu0 0.0
        %804 = vmatpush1.msra.mxu0 %v788
        %805 = vmatprep.subr.mxu0 0.0
        %806 = vmatpush1.msra.mxu0 %v789
        %807 = vmatprep.subr.mxu0 0.0
        %808 = vmatpush1.msra.mxu0 %v790
        %809 = vmatprep.subr.mxu0 0.0
        %810 = vmatpush1.msra.mxu0 0.0
        %811 = vmatprep.subr.mxu0 0.0
        %812 = vmatpush1.msra.mxu0 0.0
        %813 = vmatprep.subr.mxu0 0.0
        %814 = vmatpush1.msra.mxu0 0.0
        %815 = vmatprep.subr.mxu0 0.0
        %816 = vmatpush1.msra.mxu0 0.0
        %817 = vmatprep.subr.mxu0 0.0
        %818 = vmatpush1.msra.mxu0 0.0
        %819 = vmatprep.subr.mxu0 0.0
        %820 = vmatpush1.msra.mxu0 0.0
        %821 = vmatprep.subr.mxu0 0.0
        %822 = vmatpush1.msra.mxu0 0.0
        %823 = vmatprep.subr.mxu0 0.0
        %824 = vmatpush1.msra.mxu0 0.0
        %825 = vmatprep.subr.mxu0 0.0
        %826 = vmatpush1.msra.mxu0 0.0
        %827 = vmatprep.subr.mxu0 0.0
        %828 = vmatpush1.msra.mxu0 0.0
        %829 = vmatprep.subr.mxu0 0.0
        %830 = vmatpush1.msra.mxu0 0.0
        %831 = vmatprep.subr.mxu0 0.0
        %832 = vmatpush1.msra.mxu0 0.0
        %833 = vmatprep.subr.mxu0 0.0
        %834 = vmatpush1.msra.mxu0 0.0
        %835 = vmatprep.subr.mxu0 0.0
        %836 = vmatpush1.msra.mxu0 0.0
        %837 = vmatprep.subr.mxu0 0.0
        %838 = vmatpush1.msra.mxu0 0.0
        %839 = vmatprep.subr.mxu0 0.0
        %840 = vmatpush1.msra.mxu0 0.0
        %841 = vmatprep.subr.mxu0 0.0
        %842 = vmatpush1.msra.mxu0 0.0
        %843 = vmatprep.subr.mxu0 0.0
        %844 = vmatpush1.msra.mxu0 0.0
        %845 = vmatprep.subr.mxu0 0.0
        %846 = vmatpush1.msra.mxu0 0.0
        %847 = vmatprep.subr.mxu0 0.0
        %848 = vmatpush1.msra.mxu0 0.0
        %849 = vmatprep.subr.mxu0 0.0
        %850 = vmatpush1.msra.mxu0 0.0
        %851 = vmatprep.subr.mxu0 0.0
        %852 = vmatpush1.msra.mxu0 0.0
        %853 = vmatprep.subr.mxu0 0.0
        %854 = vmatpush1.msra.mxu0 0.0
        %855 = vmatprep.subr.mxu0 0.0
        %856 = vmatpush1.msra.mxu0 0.0
        %857 = vmatprep.subr.mxu0 0.0
        %858 = vmatpush1.msra.mxu0 0.0
        %859 = vmatprep.subr.mxu0 0.0
        %860 = vmatpush1.msra.mxu0 0.0
        %861 = vmatprep.subr.mxu0 0.0
        %862 = vmatpush1.msra.mxu0 0.0
        %863 = vmatprep.subr.mxu0 0.0
        %864 = vmatpush1.msra.mxu0 0.0
        %865 = vmatprep.mubr.f32.mxu0 0.0
        %866 = vmatmul.mubr.f32.gmra.mrb[0].mxu0 %v799
        %v867 = vpop.f32.mrb[0].mxu0
        %v868 = vadd.f32 %v796, %v867
        %v869 = vpop.f32.mrb[0].mxu0
        %870 = vdwg.mxu0
        %v871 = vld [vmem:[#allocation14] sm:$0xff]
        %v872 = vld [vmem:[#allocation14 + $0x8] sm:$0xff]
        %v873 = vld [vmem:[#allocation14 + $0x10] sm:$0xff]
        %v874 = vld [vmem:[#allocation14 + $0x18] sm:$0xff]
        %p875 = scmp.eq.s32.totalorder %s38, 0
        // Predicated region
        $region93: #{tpu_custom_call.1} parent=63 // pred_check
          %p876 = pneg %p875
        $region94: #{tpu_custom_call.1} parent=63 // pred_check_branch
          %878 = sbr.rel (%p876) target = $region96
        $region95: #{tpu_custom_call.1} parent=63 // pred_region
          %879 = vst.msk [vmem:[#allocation2] sm:$0xff] %vm629, 0.0
        $region96: #{tpu_custom_call.1} parent=63 // pred_fallthru
          _
        %vm880 = vcmask 64512
        %v882 = vsel %vm880, %v700, 0
        %v885 = vsel %vm880, %v784, 0
        %887 = vmatprep.subr.mxu0 0.0
        %888 = vmatpush1.xpose.msra.mxu0 %v885
        %889 = vmatprep.subr.mxu0 0.0
        %890 = vmatpush1.xpose.msra.mxu0 0.0
        %891 = vmatprep.subr.mxu0 0.0
        %892 = vmatpush1.xpose.msra.mxu0 0.0
        %893 = vmatprep.subr.mxu0 0.0
        %894 = vmatpush1.xpose.msra.mxu0 0.0
        %895 = vmatprep.subr.mxu0 0.0
        %896 = vmatpush1.xpose.msra.mxu0 0.0
        %897 = vmatprep.subr.mxu0 0.0
        %898 = vmatpush1.xpose.msra.mxu0 0.0
        %899 = vmatprep.subr.mxu0 0.0
        %900 = vmatpush1.xpose.msra.mxu0 0.0
        %901 = vmatprep.subr.mxu0 0.0
        %902 = vmatpush1.xpose.msra.mxu0 0.0
        %903 = vmatprep.subr.mxu0 0.0
        %904 = vmatpush1.xpose.msra.mxu0 0.0
        %905 = vmatprep.subr.mxu0 0.0
        %906 = vmatpush1.xpose.msra.mxu0 0.0
        %907 = vmatprep.subr.mxu0 0.0
        %908 = vmatpush1.xpose.msra.mxu0 0.0
        %909 = vmatprep.subr.mxu0 0.0
        %910 = vmatpush1.xpose.msra.mxu0 0.0
        %911 = vmatprep.subr.mxu0 0.0
        %912 = vmatpush1.xpose.msra.mxu0 0.0
        %913 = vmatprep.subr.mxu0 0.0
        %914 = vmatpush1.xpose.msra.mxu0 0.0
        %915 = vmatprep.subr.mxu0 0.0
        %916 = vmatpush1.xpose.msra.mxu0 0.0
        %917 = vmatprep.subr.mxu0 0.0
        %918 = vmatpush1.xpose.msra.mxu0 0.0
        %919 = vmatprep.subr.mxu0 0.0
        %920 = vmatpush1.xpose.msra.mxu0 0.0
        %921 = vmatprep.subr.mxu0 0.0
        %922 = vmatpush1.xpose.msra.mxu0 0.0
        %923 = vmatprep.subr.mxu0 0.0
        %924 = vmatpush1.xpose.msra.mxu0 0.0
        %925 = vmatprep.subr.mxu0 0.0
        %926 = vmatpush1.xpose.msra.mxu0 0.0
        %927 = vmatprep.subr.mxu0 0.0
        %928 = vmatpush1.xpose.msra.mxu0 0.0
        %929 = vmatprep.subr.mxu0 0.0
        %930 = vmatpush1.xpose.msra.mxu0 0.0
        %931 = vmatprep.subr.mxu0 0.0
        %932 = vmatpush1.xpose.msra.mxu0 0.0
        %933 = vmatprep.subr.mxu0 0.0
        %934 = vmatpush1.xpose.msra.mxu0 0.0
        %935 = vmatprep.subr.mxu0 0.0
        %936 = vmatpush1.xpose.msra.mxu0 0.0
        %937 = vmatprep.subr.mxu0 0.0
        %938 = vmatpush1.xpose.msra.mxu0 0.0
        %939 = vmatprep.subr.mxu0 0.0
        %940 = vmatpush1.xpose.msra.mxu0 0.0
        %941 = vmatprep.subr.mxu0 0.0
        %942 = vmatpush1.xpose.msra.mxu0 0.0
        %943 = vmatprep.subr.mxu0 0.0
        %944 = vmatpush1.xpose.msra.mxu0 0.0
        %945 = vmatprep.subr.mxu0 0.0
        %946 = vmatpush1.xpose.msra.mxu0 0.0
        %947 = vmatprep.subr.mxu0 0.0
        %948 = vmatpush1.xpose.msra.mxu0 0.0
        %949 = vmatprep.subr.mxu0 0.0
        %950 = vmatpush1.xpose.msra.mxu0 0.0
        %951 = vmatprep.mubr.f32.mxu0 0.0
        %952 = vmatmul.mubr.f32.gmra.mrb[0].mxu0 %v882
        %v953 = vpop.f32.mrb[0].mxu0
        %v954 = vadd.f32 0.0, %v953
        %v955 = vpop.f32.mrb[0].mxu0
        %956 = vdwg.mxu0
        %v957 = vsel %vm880, %v954, -inf
        %958 = vmax.xlane.f32.xlu0 %v957
        %v959 = vpop.xlane.xlu0 %958
        %v960 = vsub.f32 %v954, %v959
        %v961 = vmul.f32 %v960, 1.442695
        %v962 = vpow.pop %v961
        %v963 = vsel %vm880, %v962, 0.0
        %964 = vadd.xlane.f32.xlu0 %v963
        %v965 = vpop.xlane.xlu0 %964
        %v966 = vrcp.pop %v965
        %v967 = vmul.f32 %v962, %v966
        %v969 = vsel %vm880, %v967, 0
        %971 = vmatprep.subr.mxu0 0.0
        %972 = vmatpush1.msra.mxu0 %v868
        %973 = vmatprep.subr.mxu0 0.0
        %974 = vmatpush1.msra.mxu0 0.0
        %975 = vmatprep.subr.mxu0 0.0
        %976 = vmatpush1.msra.mxu0 0.0
        %977 = vmatprep.subr.mxu0 0.0
        %978 = vmatpush1.msra.mxu0 0.0
        %979 = vmatprep.subr.mxu0 0.0
        %980 = vmatpush1.msra.mxu0 0.0
        %981 = vmatprep.subr.mxu0 0.0
        %982 = vmatpush1.msra.mxu0 0.0
        %983 = vmatprep.subr.mxu0 0.0
        %984 = vmatpush1.msra.mxu0 0.0
        %985 = vmatprep.subr.mxu0 0.0
        %986 = vmatpush1.msra.mxu0 0.0
        %987 = vmatprep.subr.mxu0 0.0
        %988 = vmatpush1.msra.mxu0 0.0
        %989 = vmatprep.subr.mxu0 0.0
        %990 = vmatpush1.msra.mxu0 0.0
        %991 = vmatprep.subr.mxu0 0.0
        %992 = vmatpush1.msra.mxu0 0.0
        %993 = vmatprep.subr.mxu0 0.0
        %994 = vmatpush1.msra.mxu0 0.0
        %995 = vmatprep.subr.mxu0 0.0
        %996 = vmatpush1.msra.mxu0 0.0
        %997 = vmatprep.subr.mxu0 0.0
        %998 = vmatpush1.msra.mxu0 0.0
        %999 = vmatprep.subr.mxu0 0.0
        %1000 = vmatpush1.msra.mxu0 0.0
        %1001 = vmatprep.subr.mxu0 0.0
        %1002 = vmatpush1.msra.mxu0 0.0
        %1003 = vmatprep.subr.mxu0 0.0
        %1004 = vmatpush1.msra.mxu0 0.0
        %1005 = vmatprep.subr.mxu0 0.0
        %1006 = vmatpush1.msra.mxu0 0.0
        %1007 = vmatprep.subr.mxu0 0.0
        %1008 = vmatpush1.msra.mxu0 0.0
        %1009 = vmatprep.subr.mxu0 0.0
        %1010 = vmatpush1.msra.mxu0 0.0
        %1011 = vmatprep.subr.mxu0 0.0
        %1012 = vmatpush1.msra.mxu0 0.0
        %1013 = vmatprep.subr.mxu0 0.0
        %1014 = vmatpush1.msra.mxu0 0.0
        %1015 = vmatprep.subr.mxu0 0.0
        %1016 = vmatpush1.msra.mxu0 0.0
        %1017 = vmatprep.subr.mxu0 0.0
        %1018 = vmatpush1.msra.mxu0 0.0
        %1019 = vmatprep.subr.mxu0 0.0
        %1020 = vmatpush1.msra.mxu0 0.0
        %1021 = vmatprep.subr.mxu0 0.0
        %1022 = vmatpush1.msra.mxu0 0.0
        %1023 = vmatprep.subr.mxu0 0.0
        %1024 = vmatpush1.msra.mxu0 0.0
        %1025 = vmatprep.subr.mxu0 0.0
        %1026 = vmatpush1.msra.mxu0 0.0
        %1027 = vmatprep.subr.mxu0 0.0
        %1028 = vmatpush1.msra.mxu0 0.0
        %1029 = vmatprep.subr.mxu0 0.0
        %1030 = vmatpush1.msra.mxu0 0.0
        %1031 = vmatprep.subr.mxu0 0.0
        %1032 = vmatpush1.msra.mxu0 0.0
        %1033 = vmatprep.subr.mxu0 0.0
        %1034 = vmatpush1.msra.mxu0 0.0
        %1035 = vmatprep.mubr.f32.mxu0 0.0
        %1036 = vmatmul.mubr.f32.gmra.mrb[0].mxu0 %v969
        %v1037 = vpop.f32.mrb[0].mxu0
        %v1038 = vadd.f32 0.0, %v1037
        %v1039 = vpop.f32.mrb[0].mxu0
        %1040 = vdwg.mxu0
        %v1041 = vld [vmem:[#allocation2] sm:$0xff]
        %v1043 = vsel %vm880, %v1038, 0
        %1045 = vmatprep.subr.mxu0 0.0
        %1046 = vmatpush1.msra.mxu0 %v871
        %1047 = vmatprep.subr.mxu0 0.0
        %1048 = vmatpush1.msra.mxu0 0.0
        %1049 = vmatprep.subr.mxu0 0.0
        %1050 = vmatpush1.msra.mxu0 0.0
        %1051 = vmatprep.subr.mxu0 0.0
        %1052 = vmatpush1.msra.mxu0 0.0
        %1053 = vmatprep.subr.mxu0 0.0
        %1054 = vmatpush1.msra.mxu0 0.0
        %1055 = vmatprep.subr.mxu0 0.0
        %1056 = vmatpush1.msra.mxu0 0.0
        %1057 = vmatprep.subr.mxu0 0.0
        %1058 = vmatpush1.msra.mxu0 0.0
        %1059 = vmatprep.subr.mxu0 0.0
        %1060 = vmatpush1.msra.mxu0 0.0
        %1061 = vmatprep.subr.mxu0 0.0
        %1062 = vmatpush1.msra.mxu0 0.0
        %1063 = vmatprep.subr.mxu0 0.0
        %1064 = vmatpush1.msra.mxu0 0.0
        %1065 = vmatprep.subr.mxu0 0.0
        %1066 = vmatpush1.msra.mxu0 0.0
        %1067 = vmatprep.subr.mxu0 0.0
        %1068 = vmatpush1.msra.mxu0 0.0
        %1069 = vmatprep.subr.mxu0 0.0
        %1070 = vmatpush1.msra.mxu0 0.0
        %1071 = vmatprep.subr.mxu0 0.0
        %1072 = vmatpush1.msra.mxu0 0.0
        %1073 = vmatprep.subr.mxu0 0.0
        %1074 = vmatpush1.msra.mxu0 0.0
        %1075 = vmatprep.subr.mxu0 0.0
        %1076 = vmatpush1.msra.mxu0 0.0
        %1077 = vmatprep.subr.mxu0 0.0
        %1078 = vmatpush1.msra.mxu0 0.0
        %1079 = vmatprep.subr.mxu0 0.0
        %1080 = vmatpush1.msra.mxu0 0.0
        %1081 = vmatprep.subr.mxu0 0.0
        %1082 = vmatpush1.msra.mxu0 0.0
        %1083 = vmatprep.subr.mxu0 0.0
        %1084 = vmatpush1.msra.mxu0 0.0
        %1085 = vmatprep.subr.mxu0 0.0
        %1086 = vmatpush1.msra.mxu0 0.0
        %1087 = vmatprep.subr.mxu0 0.0
        %1088 = vmatpush1.msra.mxu0 0.0
        %1089 = vmatprep.subr.mxu0 0.0
        %1090 = vmatpush1.msra.mxu0 0.0
        %1091 = vmatprep.subr.mxu0 0.0
        %1092 = vmatpush1.msra.mxu0 0.0
        %1093 = vmatprep.subr.mxu0 0.0
        %1094 = vmatpush1.msra.mxu0 0.0
        %1095 = vmatprep.subr.mxu0 0.0
        %1096 = vmatpush1.msra.mxu0 0.0
        %1097 = vmatprep.subr.mxu0 0.0
        %1098 = vmatpush1.msra.mxu0 0.0
        %1099 = vmatprep.subr.mxu0 0.0
        %1100 = vmatpush1.msra.mxu0 0.0
        %1101 = vmatprep.subr.mxu0 0.0
        %1102 = vmatpush1.msra.mxu0 0.0
        %1103 = vmatprep.subr.mxu0 0.0
        %1104 = vmatpush1.msra.mxu0 0.0
        %1105 = vmatprep.subr.mxu0 0.0
        %1106 = vmatpush1.msra.mxu0 0.0
        %1107 = vmatprep.subr.mxu0 0.0
        %1108 = vmatpush1.msra.mxu0 0.0
        %1109 = vmatprep.mubr.f32.mxu0 0.0
        %1110 = vmatmul.mubr.f32.gmra.mrb[0].mxu0 %v1043
        %v1111 = vpop.f32.mrb[0].mxu0
        %v1112 = vadd.f32 0.0, %v1111
        %v1113 = vpop.f32.mrb[0].mxu0
        %1114 = vdwg.mxu0
        %v1115 = vadd.f32 %v1041, %v1112
        %1116 = vst.msk [vmem:[#allocation2] sm:$0xff] %vm629, %v1115
        %1117 = vrot.lane.b32.xlu0 %v700, 120
        %v1118 = vpop.permute.xlu0 %1117
        %1119 = vrot.lane.b32.xlu0 %v784, 120
        %v1120 = vpop.permute.xlu0 %1119
        %v1121 = vsel %vm880, %v1118, 0
        %v1123 = vsel %vm880, %v1120, 0
        %1125 = vmatprep.subr.mxu0 0.0
        %1126 = vmatpush1.xpose.msra.mxu0 %v1123
        %1127 = vmatprep.subr.mxu0 0.0
        %1128 = vmatpush1.xpose.msra.mxu0 0.0
        %1129 = vmatprep.subr.mxu0 0.0
        %1130 = vmatpush1.xpose.msra.mxu0 0.0
        %1131 = vmatprep.subr.mxu0 0.0
        %1132 = vmatpush1.xpose.msra.mxu0 0.0
        %1133 = vmatprep.subr.mxu0 0.0
        %1134 = vmatpush1.xpose.msra.mxu0 0.0
        %1135 = vmatprep.subr.mxu0 0.0
        %1136 = vmatpush1.xpose.msra.mxu0 0.0
        %1137 = vmatprep.subr.mxu0 0.0
        %1138 = vmatpush1.xpose.msra.mxu0 0.0
        %1139 = vmatprep.subr.mxu0 0.0
        %1140 = vmatpush1.xpose.msra.mxu0 0.0
        %1141 = vmatprep.subr.mxu0 0.0
        %1142 = vmatpush1.xpose.msra.mxu0 0.0
        %1143 = vmatprep.subr.mxu0 0.0
        %1144 = vmatpush1.xpose.msra.mxu0 0.0
        %1145 = vmatprep.subr.mxu0 0.0
        %1146 = vmatpush1.xpose.msra.mxu0 0.0
        %1147 = vmatprep.subr.mxu0 0.0
        %1148 = vmatpush1.xpose.msra.mxu0 0.0
        %1149 = vmatprep.subr.mxu0 0.0
        %1150 = vmatpush1.xpose.msra.mxu0 0.0
        %1151 = vmatprep.subr.mxu0 0.0
        %1152 = vmatpush1.xpose.msra.mxu0 0.0
        %1153 = vmatprep.subr.mxu0 0.0
        %1154 = vmatpush1.xpose.msra.mxu0 0.0
        %1155 = vmatprep.subr.mxu0 0.0
        %1156 = vmatpush1.xpose.msra.mxu0 0.0
        %1157 = vmatprep.subr.mxu0 0.0
        %1158 = vmatpush1.xpose.msra.mxu0 0.0
        %1159 = vmatprep.subr.mxu0 0.0
        %1160 = vmatpush1.xpose.msra.mxu0 0.0
        %1161 = vmatprep.subr.mxu0 0.0
        %1162 = vmatpush1.xpose.msra.mxu0 0.0
        %1163 = vmatprep.subr.mxu0 0.0
        %1164 = vmatpush1.xpose.msra.mxu0 0.0
        %1165 = vmatprep.subr.mxu0 0.0
        %1166 = vmatpush1.xpose.msra.mxu0 0.0
        %1167 = vmatprep.subr.mxu0 0.0
        %1168 = vmatpush1.xpose.msra.mxu0 0.0
        %1169 = vmatprep.subr.mxu0 0.0
        %1170 = vmatpush1.xpose.msra.mxu0 0.0
        %1171 = vmatprep.subr.mxu0 0.0
        %1172 = vmatpush1.xpose.msra.mxu0 0.0
        %1173 = vmatprep.subr.mxu0 0.0
        %1174 = vmatpush1.xpose.msra.mxu0 0.0
        %1175 = vmatprep.subr.mxu0 0.0
        %1176 = vmatpush1.xpose.msra.mxu0 0.0
        %1177 = vmatprep.subr.mxu0 0.0
        %1178 = vmatpush1.xpose.msra.mxu0 0.0
        %1179 = vmatprep.subr.mxu0 0.0
        %1180 = vmatpush1.xpose.msra.mxu0 0.0
        %1181 = vmatprep.subr.mxu0 0.0
        %1182 = vmatpush1.xpose.msra.mxu0 0.0
        %1183 = vmatprep.subr.mxu0 0.0
        %1184 = vmatpush1.xpose.msra.mxu0 0.0
        %1185 = vmatprep.subr.mxu0 0.0
        %1186 = vmatpush1.xpose.msra.mxu0 0.0
        %1187 = vmatprep.subr.mxu0 0.0
        %1188 = vmatpush1.xpose.msra.mxu0 0.0
        %1189 = vmatprep.mubr.f32.mxu0 0.0
        %1190 = vmatmul.mubr.f32.gmra.mrb[0].mxu0 %v1121
        %v1191 = vpop.f32.mrb[0].mxu0
        %v1192 = vadd.f32 0.0, %v1191
        %v1193 = vpop.f32.mrb[0].mxu0
        %1194 = vdwg.mxu0
        %v1195 = vsel %vm880, %v1192, -inf
        %1196 = vmax.xlane.f32.xlu0 %v1195
        %v1197 = vpop.xlane.xlu0 %1196
        %v1198 = vsub.f32 %v1192, %v1197
        %v1199 = vmul.f32 %v1198, 1.442695
        %v1200 = vpow.pop %v1199
        %v1201 = vsel %vm880, %v1200, 0.0
        %1202 = vadd.xlane.f32.xlu0 %v1201
        %v1203 = vpop.xlane.xlu0 %1202
        %v1204 = vrcp.pop %v1203
        %v1205 = vmul.f32 %v1200, %v1204
        %1207 = vrot.lane.b32.xlu0 %v868, 120
        %v1208 = vpop.permute.xlu0 %1207
        %v1211 = vsel %vm880, %v1205, 0
        %1213 = vmatprep.subr.mxu0 0.0
        %1214 = vmatpush1.msra.mxu0 %v1208
        %1215 = vmatprep.subr.mxu0 0.0
        %1216 = vmatpush1.msra.mxu0 0.0
        %1217 = vmatprep.subr.mxu0 0.0
        %1218 = vmatpush1.msra.mxu0 0.0
        %1219 = vmatprep.subr.mxu0 0.0
        %1220 = vmatpush1.msra.mxu0 0.0
        %1221 = vmatprep.subr.mxu0 0.0
        %1222 = vmatpush1.msra.mxu0 0.0
        %1223 = vmatprep.subr.mxu0 0.0
        %1224 = vmatpush1.msra.mxu0 0.0
        %1225 = vmatprep.subr.mxu0 0.0
        %1226 = vmatpush1.msra.mxu0 0.0
        %1227 = vmatprep.subr.mxu0 0.0
        %1228 = vmatpush1.msra.mxu0 0.0
        %1229 = vmatprep.subr.mxu0 0.0
        %1230 = vmatpush1.msra.mxu0 0.0
        %1231 = vmatprep.subr.mxu0 0.0
        %1232 = vmatpush1.msra.mxu0 0.0
        %1233 = vmatprep.subr.mxu0 0.0
        %1234 = vmatpush1.msra.mxu0 0.0
        %1235 = vmatprep.subr.mxu0 0.0
        %1236 = vmatpush1.msra.mxu0 0.0
        %1237 = vmatprep.subr.mxu0 0.0
        %1238 = vmatpush1.msra.mxu0 0.0
        %1239 = vmatprep.subr.mxu0 0.0
        %1240 = vmatpush1.msra.mxu0 0.0
        %1241 = vmatprep.subr.mxu0 0.0
        %1242 = vmatpush1.msra.mxu0 0.0
        %1243 = vmatprep.subr.mxu0 0.0
        %1244 = vmatpush1.msra.mxu0 0.0
        %1245 = vmatprep.subr.mxu0 0.0
        %1246 = vmatpush1.msra.mxu0 0.0
        %1247 = vmatprep.subr.mxu0 0.0
        %1248 = vmatpush1.msra.mxu0 0.0
        %1249 = vmatprep.subr.mxu0 0.0
        %1250 = vmatpush1.msra.mxu0 0.0
        %1251 = vmatprep.subr.mxu0 0.0
        %1252 = vmatpush1.msra.mxu0 0.0
        %1253 = vmatprep.subr.mxu0 0.0
        %1254 = vmatpush1.msra.mxu0 0.0
        %1255 = vmatprep.subr.mxu0 0.0
        %1256 = vmatpush1.msra.mxu0 0.0
        %1257 = vmatprep.subr.mxu0 0.0
        %1258 = vmatpush1.msra.mxu0 0.0
        %1259 = vmatprep.subr.mxu0 0.0
        %1260 = vmatpush1.msra.mxu0 0.0
        %1261 = vmatprep.subr.mxu0 0.0
        %1262 = vmatpush1.msra.mxu0 0.0
        %1263 = vmatprep.subr.mxu0 0.0
        %1264 = vmatpush1.msra.mxu0 0.0
        %1265 = vmatprep.subr.mxu0 0.0
        %1266 = vmatpush1.msra.mxu0 0.0
        %1267 = vmatprep.subr.mxu0 0.0
        %1268 = vmatpush1.msra.mxu0 0.0
        %1269 = vmatprep.subr.mxu0 0.0
        %1270 = vmatpush1.msra.mxu0 0.0
        %1271 = vmatprep.subr.mxu0 0.0
        %1272 = vmatpush1.msra.mxu0 0.0
        %1273 = vmatprep.subr.mxu0 0.0
        %1274 = vmatpush1.msra.mxu0 0.0
        %1275 = vmatprep.subr.mxu0 0.0
        %1276 = vmatpush1.msra.mxu0 0.0
        %1277 = vmatprep.mubr.f32.mxu0 0.0
        %1278 = vmatmul.mubr.f32.gmra.mrb[0].mxu0 %v1211
        %v1279 = vpop.f32.mrb[0].mxu0
        %v1280 = vadd.f32 0.0, %v1279
        %v1281 = vpop.f32.mrb[0].mxu0
        %1282 = vdwg.mxu0
        %v1283 = vld [vmem:[#allocation2] sm:$0xff]
        %v1285 = vsel %vm880, %v1280, 0
        %1287 = vmatprep.subr.mxu0 0.0
        %1288 = vmatpush1.msra.mxu0 %v872
        %1289 = vmatprep.subr.mxu0 0.0
        %1290 = vmatpush1.msra.mxu0 0.0
        %1291 = vmatprep.subr.mxu0 0.0
        %1292 = vmatpush1.msra.mxu0 0.0
        %1293 = vmatprep.subr.mxu0 0.0
        %1294 = vmatpush1.msra.mxu0 0.0
        %1295 = vmatprep.subr.mxu0 0.0
        %1296 = vmatpush1.msra.mxu0 0.0
        %1297 = vmatprep.subr.mxu0 0.0
        %1298 = vmatpush1.msra.mxu0 0.0
        %1299 = vmatprep.subr.mxu0 0.0
        %1300 = vmatpush1.msra.mxu0 0.0
        %1301 = vmatprep.subr.mxu0 0.0
        %1302 = vmatpush1.msra.mxu0 0.0
        %1303 = vmatprep.subr.mxu0 0.0
        %1304 = vmatpush1.msra.mxu0 0.0
        %1305 = vmatprep.subr.mxu0 0.0
        %1306 = vmatpush1.msra.mxu0 0.0
        %1307 = vmatprep.subr.mxu0 0.0
        %1308 = vmatpush1.msra.mxu0 0.0
        %1309 = vmatprep.subr.mxu0 0.0
        %1310 = vmatpush1.msra.mxu0 0.0
        %1311 = vmatprep.subr.mxu0 0.0
        %1312 = vmatpush1.msra.mxu0 0.0
        %1313 = vmatprep.subr.mxu0 0.0
        %1314 = vmatpush1.msra.mxu0 0.0
        %1315 = vmatprep.subr.mxu0 0.0
        %1316 = vmatpush1.msra.mxu0 0.0
        %1317 = vmatprep.subr.mxu0 0.0
        %1318 = vmatpush1.msra.mxu0 0.0
        %1319 = vmatprep.subr.mxu0 0.0
        %1320 = vmatpush1.msra.mxu0 0.0
        %1321 = vmatprep.subr.mxu0 0.0
        %1322 = vmatpush1.msra.mxu0 0.0
        %1323 = vmatprep.subr.mxu0 0.0
        %1324 = vmatpush1.msra.mxu0 0.0
        %1325 = vmatprep.subr.mxu0 0.0
        %1326 = vmatpush1.msra.mxu0 0.0
        %1327 = vmatprep.subr.mxu0 0.0
        %1328 = vmatpush1.msra.mxu0 0.0
        %1329 = vmatprep.subr.mxu0 0.0
        %1330 = vmatpush1.msra.mxu0 0.0
        %1331 = vmatprep.subr.mxu0 0.0
        %1332 = vmatpush1.msra.mxu0 0.0
        %1333 = vmatprep.subr.mxu0 0.0
        %1334 = vmatpush1.msra.mxu0 0.0
        %1335 = vmatprep.subr.mxu0 0.0
        %1336 = vmatpush1.msra.mxu0 0.0
        %1337 = vmatprep.subr.mxu0 0.0
        %1338 = vmatpush1.msra.mxu0 0.0
        %1339 = vmatprep.subr.mxu0 0.0
        %1340 = vmatpush1.msra.mxu0 0.0
        %1341 = vmatprep.subr.mxu0 0.0
        %1342 = vmatpush1.msra.mxu0 0.0
        %1343 = vmatprep.subr.mxu0 0.0
        %1344 = vmatpush1.msra.mxu0 0.0
        %1345 = vmatprep.subr.mxu0 0.0
        %1346 = vmatpush1.msra.mxu0 0.0
        %1347 = vmatprep.subr.mxu0 0.0
        %1348 = vmatpush1.msra.mxu0 0.0
        %1349 = vmatprep.subr.mxu0 0.0
        %1350 = vmatpush1.msra.mxu0 0.0
        %1351 = vmatprep.mubr.f32.mxu0 0.0
        %1352 = vmatmul.mubr.f32.gmra.mrb[0].mxu0 %v1285
        %v1353 = vpop.f32.mrb[0].mxu0
        %v1354 = vadd.f32 0.0, %v1353
        %v1355 = vpop.f32.mrb[0].mxu0
        %1356 = vdwg.mxu0
        %v1357 = vadd.f32 %v1283, %v1354
        %1358 = vst.msk [vmem:[#allocation2] sm:$0xff] %vm629, %v1357
        %1359 = vrot.lane.b32.xlu0 %v700, 112
        %v1360 = vpop.permute.xlu0 %1359
        %1361 = vrot.lane.b32.xlu0 %v784, 112
        %v1362 = vpop.permute.xlu0 %1361
        %v1363 = vsel %vm880, %v1360, 0
        %v1365 = vsel %vm880, %v1362, 0
        %1367 = vmatprep.subr.mxu0 0.0
        %1368 = vmatpush1.xpose.msra.mxu0 %v1365
        %1369 = vmatprep.subr.mxu0 0.0
        %1370 = vmatpush1.xpose.msra.mxu0 0.0
        %1371 = vmatprep.subr.mxu0 0.0
        %1372 = vmatpush1.xpose.msra.mxu0 0.0
        %1373 = vmatprep.subr.mxu0 0.0
        %1374 = vmatpush1.xpose.msra.mxu0 0.0
        %1375 = vmatprep.subr.mxu0 0.0
        %1376 = vmatpush1.xpose.msra.mxu0 0.0
        %1377 = vmatprep.subr.mxu0 0.0
        %1378 = vmatpush1.xpose.msra.mxu0 0.0
        %1379 = vmatprep.subr.mxu0 0.0
        %1380 = vmatpush1.xpose.msra.mxu0 0.0
        %1381 = vmatprep.subr.mxu0 0.0
        %1382 = vmatpush1.xpose.msra.mxu0 0.0
        %1383 = vmatprep.subr.mxu0 0.0
        %1384 = vmatpush1.xpose.msra.mxu0 0.0
        %1385 = vmatprep.subr.mxu0 0.0
        %1386 = vmatpush1.xpose.msra.mxu0 0.0
        %1387 = vmatprep.subr.mxu0 0.0
        %1388 = vmatpush1.xpose.msra.mxu0 0.0
        %1389 = vmatprep.subr.mxu0 0.0
        %1390 = vmatpush1.xpose.msra.mxu0 0.0
        %1391 = vmatprep.subr.mxu0 0.0
        %1392 = vmatpush1.xpose.msra.mxu0 0.0
        %1393 = vmatprep.subr.mxu0 0.0
        %1394 = vmatpush1.xpose.msra.mxu0 0.0
        %1395 = vmatprep.subr.mxu0 0.0
        %1396 = vmatpush1.xpose.msra.mxu0 0.0
        %1397 = vmatprep.subr.mxu0 0.0
        %1398 = vmatpush1.xpose.msra.mxu0 0.0
        %1399 = vmatprep.subr.mxu0 0.0
        %1400 = vmatpush1.xpose.msra.mxu0 0.0
        %1401 = vmatprep.subr.mxu0 0.0
        %1402 = vmatpush1.xpose.msra.mxu0 0.0
        %1403 = vmatprep.subr.mxu0 0.0
        %1404 = vmatpush1.xpose.msra.mxu0 0.0
        %1405 = vmatprep.subr.mxu0 0.0
        %1406 = vmatpush1.xpose.msra.mxu0 0.0
        %1407 = vmatprep.subr.mxu0 0.0
        %1408 = vmatpush1.xpose.msra.mxu0 0.0
        %1409 = vmatprep.subr.mxu0 0.0
        %1410 = vmatpush1.xpose.msra.mxu0 0.0
        %1411 = vmatprep.subr.mxu0 0.0
        %1412 = vmatpush1.xpose.msra.mxu0 0.0
        %1413 = vmatprep.subr.mxu0 0.0
        %1414 = vmatpush1.xpose.msra.mxu0 0.0
        %1415 = vmatprep.subr.mxu0 0.0
        %1416 = vmatpush1.xpose.msra.mxu0 0.0
        %1417 = vmatprep.subr.mxu0 0.0
        %1418 = vmatpush1.xpose.msra.mxu0 0.0
        %1419 = vmatprep.subr.mxu0 0.0
        %1420 = vmatpush1.xpose.msra.mxu0 0.0
        %1421 = vmatprep.subr.mxu0 0.0
        %1422 = vmatpush1.xpose.msra.mxu0 0.0
        %1423 = vmatprep.subr.mxu0 0.0
        %1424 = vmatpush1.xpose.msra.mxu0 0.0
        %1425 = vmatprep.subr.mxu0 0.0
        %1426 = vmatpush1.xpose.msra.mxu0 0.0
        %1427 = vmatprep.subr.mxu0 0.0
        %1428 = vmatpush1.xpose.msra.mxu0 0.0
        %1429 = vmatprep.subr.mxu0 0.0
        %1430 = vmatpush1.xpose.msra.mxu0 0.0
        %1431 = vmatprep.mubr.f32.mxu0 0.0
        %1432 = vmatmul.mubr.f32.gmra.mrb[0].mxu0 %v1363
        %v1433 = vpop.f32.mrb[0].mxu0
        %v1434 = vadd.f32 0.0, %v1433
        %v1435 = vpop.f32.mrb[0].mxu0
        %1436 = vdwg.mxu0
        %v1437 = vsel %vm880, %v1434, -inf
        %1438 = vmax.xlane.f32.xlu0 %v1437
        %v1439 = vpop.xlane.xlu0 %1438
        %v1440 = vsub.f32 %v1434, %v1439
        %v1441 = vmul.f32 %v1440, 1.442695
        %v1442 = vpow.pop %v1441
        %v1443 = vsel %vm880, %v1442, 0.0
        %1444 = vadd.xlane.f32.xlu0 %v1443
        %v1445 = vpop.xlane.xlu0 %1444
        %v1446 = vrcp.pop %v1445
        %v1447 = vmul.f32 %v1442, %v1446
        %1448 = vrot.lane.b32.xlu0 %v868, 112
        %v1449 = vpop.permute.xlu0 %1448
        %v1452 = vsel %vm880, %v1447, 0
        %1454 = vmatprep.subr.mxu0 0.0
        %1455 = vmatpush1.msra.mxu0 %v1449
        %1456 = vmatprep.subr.mxu0 0.0
        %1457 = vmatpush1.msra.mxu0 0.0
        %1458 = vmatprep.subr.mxu0 0.0
        %1459 = vmatpush1.msra.mxu0 0.0
        %1460 = vmatprep.subr.mxu0 0.0
        %1461 = vmatpush1.msra.mxu0 0.0
        %1462 = vmatprep.subr.mxu0 0.0
        %1463 = vmatpush1.msra.mxu0 0.0
        %1464 = vmatprep.subr.mxu0 0.0
        %1465 = vmatpush1.msra.mxu0 0.0
        %1466 = vmatprep.subr.mxu0 0.0
        %1467 = vmatpush1.msra.mxu0 0.0
        %1468 = vmatprep.subr.mxu0 0.0
        %1469 = vmatpush1.msra.mxu0 0.0
        %1470 = vmatprep.subr.mxu0 0.0
        %1471 = vmatpush1.msra.mxu0 0.0
        %1472 = vmatprep.subr.mxu0 0.0
        %1473 = vmatpush1.msra.mxu0 0.0
        %1474 = vmatprep.subr.mxu0 0.0
        %1475 = vmatpush1.msra.mxu0 0.0
        %1476 = vmatprep.subr.mxu0 0.0
        %1477 = vmatpush1.msra.mxu0 0.0
        %1478 = vmatprep.subr.mxu0 0.0
        %1479 = vmatpush1.msra.mxu0 0.0
        %1480 = vmatprep.subr.mxu0 0.0
        %1481 = vmatpush1.msra.mxu0 0.0
        %1482 = vmatprep.subr.mxu0 0.0
        %1483 = vmatpush1.msra.mxu0 0.0
        %1484 = vmatprep.subr.mxu0 0.0
        %1485 = vmatpush1.msra.mxu0 0.0
        %1486 = vmatprep.subr.mxu0 0.0
        %1487 = vmatpush1.msra.mxu0 0.0
        %1488 = vmatprep.subr.mxu0 0.0
        %1489 = vmatpush1.msra.mxu0 0.0
        %1490 = vmatprep.subr.mxu0 0.0
        %1491 = vmatpush1.msra.mxu0 0.0
        %1492 = vmatprep.subr.mxu0 0.0
        %1493 = vmatpush1.msra.mxu0 0.0
        %1494 = vmatprep.subr.mxu0 0.0
        %1495 = vmatpush1.msra.mxu0 0.0
        %1496 = vmatprep.subr.mxu0 0.0
        %1497 = vmatpush1.msra.mxu0 0.0
        %1498 = vmatprep.subr.mxu0 0.0
        %1499 = vmatpush1.msra.mxu0 0.0
        %1500 = vmatprep.subr.mxu0 0.0
        %1501 = vmatpush1.msra.mxu0 0.0
        %1502 = vmatprep.subr.mxu0 0.0
        %1503 = vmatpush1.msra.mxu0 0.0
        %1504 = vmatprep.subr.mxu0 0.0
        %1505 = vmatpush1.msra.mxu0 0.0
        %1506 = vmatprep.subr.mxu0 0.0
        %1507 = vmatpush1.msra.mxu0 0.0
        %1508 = vmatprep.subr.mxu0 0.0
        %1509 = vmatpush1.msra.mxu0 0.0
        %1510 = vmatprep.subr.mxu0 0.0
        %1511 = vmatpush1.msra.mxu0 0.0
        %1512 = vmatprep.subr.mxu0 0.0
        %1513 = vmatpush1.msra.mxu0 0.0
        %1514 = vmatprep.subr.mxu0 0.0
        %1515 = vmatpush1.msra.mxu0 0.0
        %1516 = vmatprep.subr.mxu0 0.0
        %1517 = vmatpush1.msra.mxu0 0.0
        %1518 = vmatprep.mubr.f32.mxu0 0.0
        %1519 = vmatmul.mubr.f32.gmra.mrb[0].mxu0 %v1452
        %v1520 = vpop.f32.mrb[0].mxu0
        %v1521 = vadd.f32 0.0, %v1520
        %v1522 = vpop.f32.mrb[0].mxu0
        %1523 = vdwg.mxu0
        %v1524 = vld [vmem:[#allocation2] sm:$0xff]
        %v1526 = vsel %vm880, %v1521, 0
        %1528 = vmatprep.subr.mxu0 0.0
        %1529 = vmatpush1.msra.mxu0 %v873
        %1530 = vmatprep.subr.mxu0 0.0
        %1531 = vmatpush1.msra.mxu0 0.0
        %1532 = vmatprep.subr.mxu0 0.0
        %1533 = vmatpush1.msra.mxu0 0.0
        %1534 = vmatprep.subr.mxu0 0.0
        %1535 = vmatpush1.msra.mxu0 0.0
        %1536 = vmatprep.subr.mxu0 0.0
        %1537 = vmatpush1.msra.mxu0 0.0
        %1538 = vmatprep.subr.mxu0 0.0
        %1539 = vmatpush1.msra.mxu0 0.0
        %1540 = vmatprep.subr.mxu0 0.0
        %1541 = vmatpush1.msra.mxu0 0.0
        %1542 = vmatprep.subr.mxu0 0.0
        %1543 = vmatpush1.msra.mxu0 0.0
        %1544 = vmatprep.subr.mxu0 0.0
        %1545 = vmatpush1.msra.mxu0 0.0
        %1546 = vmatprep.subr.mxu0 0.0
        %1547 = vmatpush1.msra.mxu0 0.0
        %1548 = vmatprep.subr.mxu0 0.0
        %1549 = vmatpush1.msra.mxu0 0.0
        %1550 = vmatprep.subr.mxu0 0.0
        %1551 = vmatpush1.msra.mxu0 0.0
        %1552 = vmatprep.subr.mxu0 0.0
        %1553 = vmatpush1.msra.mxu0 0.0
        %1554 = vmatprep.subr.mxu0 0.0
        %1555 = vmatpush1.msra.mxu0 0.0
        %1556 = vmatprep.subr.mxu0 0.0
        %1557 = vmatpush1.msra.mxu0 0.0
        %1558 = vmatprep.subr.mxu0 0.0
        %1559 = vmatpush1.msra.mxu0 0.0
        %1560 = vmatprep.subr.mxu0 0.0
        %1561 = vmatpush1.msra.mxu0 0.0
        %1562 = vmatprep.subr.mxu0 0.0
        %1563 = vmatpush1.msra.mxu0 0.0
        %1564 = vmatprep.subr.mxu0 0.0
        %1565 = vmatpush1.msra.mxu0 0.0
        %1566 = vmatprep.subr.mxu0 0.0
        %1567 = vmatpush1.msra.mxu0 0.0
        %1568 = vmatprep.subr.mxu0 0.0
        %1569 = vmatpush1.msra.mxu0 0.0
        %1570 = vmatprep.subr.mxu0 0.0
        %1571 = vmatpush1.msra.mxu0 0.0
        %1572 = vmatprep.subr.mxu0 0.0
        %1573 = vmatpush1.msra.mxu0 0.0
        %1574 = vmatprep.subr.mxu0 0.0
        %1575 = vmatpush1.msra.mxu0 0.0
        %1576 = vmatprep.subr.mxu0 0.0
        %1577 = vmatpush1.msra.mxu0 0.0
        %1578 = vmatprep.subr.mxu0 0.0
        %1579 = vmatpush1.msra.mxu0 0.0
        %1580 = vmatprep.subr.mxu0 0.0
        %1581 = vmatpush1.msra.mxu0 0.0
        %1582 = vmatprep.subr.mxu0 0.0
        %1583 = vmatpush1.msra.mxu0 0.0
        %1584 = vmatprep.subr.mxu0 0.0
        %1585 = vmatpush1.msra.mxu0 0.0
        %1586 = vmatprep.subr.mxu0 0.0
        %1587 = vmatpush1.msra.mxu0 0.0
        %1588 = vmatprep.subr.mxu0 0.0
        %1589 = vmatpush1.msra.mxu0 0.0
        %1590 = vmatprep.subr.mxu0 0.0
        %1591 = vmatpush1.msra.mxu0 0.0
        %1592 = vmatprep.mubr.f32.mxu0 0.0
        %1593 = vmatmul.mubr.f32.gmra.mrb[0].mxu0 %v1526
        %v1594 = vpop.f32.mrb[0].mxu0
        %v1595 = vadd.f32 0.0, %v1594
        %v1596 = vpop.f32.mrb[0].mxu0
        %1597 = vdwg.mxu0
        %v1598 = vadd.f32 %v1524, %v1595
        %1599 = vst.msk [vmem:[#allocation2] sm:$0xff] %vm629, %v1598
        %1600 = vrot.lane.b32.xlu0 %v700, 104
        %v1601 = vpop.permute.xlu0 %1600
        %1602 = vrot.lane.b32.xlu0 %v784, 104
        %v1603 = vpop.permute.xlu0 %1602
        %v1604 = vsel %vm880, %v1601, 0
        %v1606 = vsel %vm880, %v1603, 0
        %1608 = vmatprep.subr.mxu0 0.0
        %1609 = vmatpush1.xpose.msra.mxu0 %v1606
        %1610 = vmatprep.subr.mxu0 0.0
        %1611 = vmatpush1.xpose.msra.mxu0 0.0
        %1612 = vmatprep.subr.mxu0 0.0
        %1613 = vmatpush1.xpose.msra.mxu0 0.0
        %1614 = vmatprep.subr.mxu0 0.0
        %1615 = vmatpush1.xpose.msra.mxu0 0.0
        %1616 = vmatprep.subr.mxu0 0.0
        %1617 = vmatpush1.xpose.msra.mxu0 0.0
        %1618 = vmatprep.subr.mxu0 0.0
        %1619 = vmatpush1.xpose.msra.mxu0 0.0
        %1620 = vmatprep.subr.mxu0 0.0
        %1621 = vmatpush1.xpose.msra.mxu0 0.0
        %1622 = vmatprep.subr.mxu0 0.0
        %1623 = vmatpush1.xpose.msra.mxu0 0.0
        %1624 = vmatprep.subr.mxu0 0.0
        %1625 = vmatpush1.xpose.msra.mxu0 0.0
        %1626 = vmatprep.subr.mxu0 0.0
        %1627 = vmatpush1.xpose.msra.mxu0 0.0
        %1628 = vmatprep.subr.mxu0 0.0
        %1629 = vmatpush1.xpose.msra.mxu0 0.0
        %1630 = vmatprep.subr.mxu0 0.0
        %1631 = vmatpush1.xpose.msra.mxu0 0.0
        %1632 = vmatprep.subr.mxu0 0.0
        %1633 = vmatpush1.xpose.msra.mxu0 0.0
        %1634 = vmatprep.subr.mxu0 0.0
        %1635 = vmatpush1.xpose.msra.mxu0 0.0
        %1636 = vmatprep.subr.mxu0 0.0
        %1637 = vmatpush1.xpose.msra.mxu0 0.0
        %1638 = vmatprep.subr.mxu0 0.0
        %1639 = vmatpush1.xpose.msra.mxu0 0.0
        %1640 = vmatprep.subr.mxu0 0.0
        %1641 = vmatpush1.xpose.msra.mxu0 0.0
        %1642 = vmatprep.subr.mxu0 0.0
        %1643 = vmatpush1.xpose.msra.mxu0 0.0
        %1644 = vmatprep.subr.mxu0 0.0
        %1645 = vmatpush1.xpose.msra.mxu0 0.0
        %1646 = vmatprep.subr.mxu0 0.0
        %1647 = vmatpush1.xpose.msra.mxu0 0.0
        %1648 = vmatprep.subr.mxu0 0.0
        %1649 = vmatpush1.xpose.msra.mxu0 0.0
        %1650 = vmatprep.subr.mxu0 0.0
        %1651 = vmatpush1.xpose.msra.mxu0 0.0
        %1652 = vmatprep.subr.mxu0 0.0
        %1653 = vmatpush1.xpose.msra.mxu0 0.0
        %1654 = vmatprep.subr.mxu0 0.0
        %1655 = vmatpush1.xpose.msra.mxu0 0.0
        %1656 = vmatprep.subr.mxu0 0.0
        %1657 = vmatpush1.xpose.msra.mxu0 0.0
        %1658 = vmatprep.subr.mxu0 0.0
        %1659 = vmatpush1.xpose.msra.mxu0 0.0
        %1660 = vmatprep.subr.mxu0 0.0
        %1661 = vmatpush1.xpose.msra.mxu0 0.0
        %1662 = vmatprep.subr.mxu0 0.0
        %1663 = vmatpush1.xpose.msra.mxu0 0.0
        %1664 = vmatprep.subr.mxu0 0.0
        %1665 = vmatpush1.xpose.msra.mxu0 0.0
        %1666 = vmatprep.subr.mxu0 0.0
        %1667 = vmatpush1.xpose.msra.mxu0 0.0
        %1668 = vmatprep.subr.mxu0 0.0
        %1669 = vmatpush1.xpose.msra.mxu0 0.0
        %1670 = vmatprep.subr.mxu0 0.0
        %1671 = vmatpush1.xpose.msra.mxu0 0.0
        %1672 = vmatprep.mubr.f32.mxu0 0.0
        %1673 = vmatmul.mubr.f32.gmra.mrb[0].mxu0 %v1604
        %v1674 = vpop.f32.mrb[0].mxu0
        %v1675 = vadd.f32 0.0, %v1674
        %v1676 = vpop.f32.mrb[0].mxu0
        %1677 = vdwg.mxu0
        %v1678 = vsel %vm880, %v1675, -inf
        %1679 = vmax.xlane.f32.xlu0 %v1678
        %v1680 = vpop.xlane.xlu0 %1679
        %v1681 = vsub.f32 %v1675, %v1680
        %v1682 = vmul.f32 %v1681, 1.442695
        %v1683 = vpow.pop %v1682
        %v1684 = vsel %vm880, %v1683, 0.0
        %1685 = vadd.xlane.f32.xlu0 %v1684
        %v1686 = vpop.xlane.xlu0 %1685
        %v1687 = vrcp.pop %v1686
        %v1688 = vmul.f32 %v1683, %v1687
        %1689 = vrot.lane.b32.xlu0 %v868, 104
        %v1690 = vpop.permute.xlu0 %1689
        %v1693 = vsel %vm880, %v1688, 0
        %1695 = vmatprep.subr.mxu0 0.0
        %1696 = vmatpush1.msra.mxu0 %v1690
        %1697 = vmatprep.subr.mxu0 0.0
        %1698 = vmatpush1.msra.mxu0 0.0
        %1699 = vmatprep.subr.mxu0 0.0
        %1700 = vmatpush1.msra.mxu0 0.0
        %1701 = vmatprep.subr.mxu0 0.0
        %1702 = vmatpush1.msra.mxu0 0.0
        %1703 = vmatprep.subr.mxu0 0.0
        %1704 = vmatpush1.msra.mxu0 0.0
        %1705 = vmatprep.subr.mxu0 0.0
        %1706 = vmatpush1.msra.mxu0 0.0
        %1707 = vmatprep.subr.mxu0 0.0
        %1708 = vmatpush1.msra.mxu0 0.0
        %1709 = vmatprep.subr.mxu0 0.0
        %1710 = vmatpush1.msra.mxu0 0.0
        %1711 = vmatprep.subr.mxu0 0.0
        %1712 = vmatpush1.msra.mxu0 0.0
        %1713 = vmatprep.subr.mxu0 0.0
        %1714 = vmatpush1.msra.mxu0 0.0
        %1715 = vmatprep.subr.mxu0 0.0
        %1716 = vmatpush1.msra.mxu0 0.0
        %1717 = vmatprep.subr.mxu0 0.0
        %1718 = vmatpush1.msra.mxu0 0.0
        %1719 = vmatprep.subr.mxu0 0.0
        %1720 = vmatpush1.msra.mxu0 0.0
        %1721 = vmatprep.subr.mxu0 0.0
        %1722 = vmatpush1.msra.mxu0 0.0
        %1723 = vmatprep.subr.mxu0 0.0
        %1724 = vmatpush1.msra.mxu0 0.0
        %1725 = vmatprep.subr.mxu0 0.0
        %1726 = vmatpush1.msra.mxu0 0.0
        %1727 = vmatprep.subr.mxu0 0.0
        %1728 = vmatpush1.msra.mxu0 0.0
        %1729 = vmatprep.subr.mxu0 0.0
        %1730 = vmatpush1.msra.mxu0 0.0
        %1731 = vmatprep.subr.mxu0 0.0
        %1732 = vmatpush1.msra.mxu0 0.0
        %1733 = vmatprep.subr.mxu0 0.0
        %1734 = vmatpush1.msra.mxu0 0.0
        %1735 = vmatprep.subr.mxu0 0.0
        %1736 = vmatpush1.msra.mxu0 0.0
        %1737 = vmatprep.subr.mxu0 0.0
        %1738 = vmatpush1.msra.mxu0 0.0
        %1739 = vmatprep.subr.mxu0 0.0
        %1740 = vmatpush1.msra.mxu0 0.0
        %1741 = vmatprep.subr.mxu0 0.0
        %1742 = vmatpush1.msra.mxu0 0.0
        %1743 = vmatprep.subr.mxu0 0.0
        %1744 = vmatpush1.msra.mxu0 0.0
        %1745 = vmatprep.subr.mxu0 0.0
        %1746 = vmatpush1.msra.mxu0 0.0
        %1747 = vmatprep.subr.mxu0 0.0
        %1748 = vmatpush1.msra.mxu0 0.0
        %1749 = vmatprep.subr.mxu0 0.0
        %1750 = vmatpush1.msra.mxu0 0.0
        %1751 = vmatprep.subr.mxu0 0.0
        %1752 = vmatpush1.msra.mxu0 0.0
        %1753 = vmatprep.subr.mxu0 0.0
        %1754 = vmatpush1.msra.mxu0 0.0
        %1755 = vmatprep.subr.mxu0 0.0
        %1756 = vmatpush1.msra.mxu0 0.0
        %1757 = vmatprep.subr.mxu0 0.0
        %1758 = vmatpush1.msra.mxu0 0.0
        %1759 = vmatprep.mubr.f32.mxu0 0.0
        %1760 = vmatmul.mubr.f32.gmra.mrb[0].mxu0 %v1693
        %v1761 = vpop.f32.mrb[0].mxu0
        %v1762 = vadd.f32 0.0, %v1761
        %v1763 = vpop.f32.mrb[0].mxu0
        %1764 = vdwg.mxu0
        %v1765 = vld [vmem:[#allocation2] sm:$0xff]
        %v1767 = vsel %vm880, %v1762, 0
        %1769 = vmatprep.subr.mxu0 0.0
        %1770 = vmatpush1.msra.mxu0 %v874
        %1771 = vmatprep.subr.mxu0 0.0
        %1772 = vmatpush1.msra.mxu0 0.0
        %1773 = vmatprep.subr.mxu0 0.0
        %1774 = vmatpush1.msra.mxu0 0.0
        %1775 = vmatprep.subr.mxu0 0.0
        %1776 = vmatpush1.msra.mxu0 0.0
        %1777 = vmatprep.subr.mxu0 0.0
        %1778 = vmatpush1.msra.mxu0 0.0
        %1779 = vmatprep.subr.mxu0 0.0
        %1780 = vmatpush1.msra.mxu0 0.0
        %1781 = vmatprep.subr.mxu0 0.0
        %1782 = vmatpush1.msra.mxu0 0.0
        %1783 = vmatprep.subr.mxu0 0.0
        %1784 = vmatpush1.msra.mxu0 0.0
        %1785 = vmatprep.subr.mxu0 0.0
        %1786 = vmatpush1.msra.mxu0 0.0
        %1787 = vmatprep.subr.mxu0 0.0
        %1788 = vmatpush1.msra.mxu0 0.0
        %1789 = vmatprep.subr.mxu0 0.0
        %1790 = vmatpush1.msra.mxu0 0.0
        %1791 = vmatprep.subr.mxu0 0.0
        %1792 = vmatpush1.msra.mxu0 0.0
        %1793 = vmatprep.subr.mxu0 0.0
        %1794 = vmatpush1.msra.mxu0 0.0
        %1795 = vmatprep.subr.mxu0 0.0
        %1796 = vmatpush1.msra.mxu0 0.0
        %1797 = vmatprep.subr.mxu0 0.0
        %1798 = vmatpush1.msra.mxu0 0.0
        %1799 = vmatprep.subr.mxu0 0.0
        %1800 = vmatpush1.msra.mxu0 0.0
        %1801 = vmatprep.subr.mxu0 0.0
        %1802 = vmatpush1.msra.mxu0 0.0
        %1803 = vmatprep.subr.mxu0 0.0
        %1804 = vmatpush1.msra.mxu0 0.0
        %1805 = vmatprep.subr.mxu0 0.0
        %1806 = vmatpush1.msra.mxu0 0.0
        %1807 = vmatprep.subr.mxu0 0.0
        %1808 = vmatpush1.msra.mxu0 0.0
        %1809 = vmatprep.subr.mxu0 0.0
        %1810 = vmatpush1.msra.mxu0 0.0
        %1811 = vmatprep.subr.mxu0 0.0
        %1812 = vmatpush1.msra.mxu0 0.0
        %1813 = vmatprep.subr.mxu0 0.0
        %1814 = vmatpush1.msra.mxu0 0.0
        %1815 = vmatprep.subr.mxu0 0.0
        %1816 = vmatpush1.msra.mxu0 0.0
        %1817 = vmatprep.subr.mxu0 0.0
        %1818 = vmatpush1.msra.mxu0 0.0
        %1819 = vmatprep.subr.mxu0 0.0
        %1820 = vmatpush1.msra.mxu0 0.0
        %1821 = vmatprep.subr.mxu0 0.0
        %1822 = vmatpush1.msra.mxu0 0.0
        %1823 = vmatprep.subr.mxu0 0.0
        %1824 = vmatpush1.msra.mxu0 0.0
        %1825 = vmatprep.subr.mxu0 0.0
        %1826 = vmatpush1.msra.mxu0 0.0
        %1827 = vmatprep.subr.mxu0 0.0
        %1828 = vmatpush1.msra.mxu0 0.0
        %1829 = vmatprep.subr.mxu0 0.0
        %1830 = vmatpush1.msra.mxu0 0.0
        %1831 = vmatprep.subr.mxu0 0.0
        %1832 = vmatpush1.msra.mxu0 0.0
        %1833 = vmatprep.mubr.f32.mxu0 0.0
        %1834 = vmatmul.mubr.f32.gmra.mrb[0].mxu0 %v1767
        %v1835 = vpop.f32.mrb[0].mxu0
        %v1836 = vadd.f32 0.0, %v1835
        %v1837 = vpop.f32.mrb[0].mxu0
        %1838 = vdwg.mxu0
        %v1839 = vadd.f32 %v1765, %v1836
        %1840 = vst.msk [vmem:[#allocation2] sm:$0xff] %vm629, %v1839
        // Predicated region
        $region97: #{tpu_custom_call.1} parent=63 // pred_check
          %p1841 = pneg %p875
        $region98: #{tpu_custom_call.1} parent=63 // pred_check_branch
          %1843 = sbr.rel (%p1841) target = $region100
        $region99: #{tpu_custom_call.1} parent=63 // pred_region
          %v1844 = vld [vmem:[#allocation2] sm:$0xff]
          %v1845 = vld [vmem:[%s10] sm:$0x1]
          %v1847 = vlaneseq
          %v1848 = vshrl.u32 %v1847, 7
          %v1849 = vsub.s32 0, %v1848
          %v1850 = vrot.slane %v1845, %v1849
          %v1852 = vadd.f32 %v1844, %v1850
          %1853 = vst.msk [vmem:[%s604] sm:$0xff] %vm629, %v1852
        $region100: #{tpu_custom_call.1} parent=63 // pred_fallthru
          _
        %s1854 = sand.u32 %s334, 1
        %s1855 = scalar_lea.sflag [#allocation5], %s1854
        %s1856 = sand.u32 %s334, 1
        %s1857 = smul.addr %s1856, 8
        %s1858 = scalar_lea.vmem [#allocation15], %s1857
        // Predicated region
        $region101: #{tpu_custom_call.1} parent=63 // pred_check
          %p1859 = pneg %p344
        $region102: #{tpu_custom_call.1} parent=63 // pred_check_branch
          %1861 = sbr.rel (%p1859) target = $region104
        $region103: #{tpu_custom_call.1} parent=63 // pred_region
          %s1863 = ssub.s32 128, 128
          %1864 = vsyncadd %s1855, %s1863
          %s1865 = smul.addr %s37, 128
          %s1866 = scalar_lea.hbm %s11, %s1865
          %s1868 = sshll.u32 %s1858, 4
          %s1869 = int_to_ptr.vmem [resolvable:$true] %s1868
          %1871 = dma.vmem_to_hbm [thread:$0]  %s1869, 128, %s1866, %s1855
        $region104: #{tpu_custom_call.1} parent=63 // pred_fallthru
          _
      $region64: #{tpu_custom_call.1} parent=5 // pred_fallthru
        _
      %p1872 = scmp.le.s32.totalorder 2, %s28
      // Predicated region
      $region105: #{tpu_custom_call.1} parent=5 // pred_check
        %p1873 = pneg %p1872
      $region106: #{tpu_custom_call.1} parent=5 // pred_check_branch
        %1875 = sbr.rel (%p1873) target = $region108
      $region107: #{tpu_custom_call.1} parent=5 // pred_region
        %s1876 = ssub.s32 %s28, 2
        // Predicated region
        $region109: #{tpu_custom_call.1} parent=107 // pred_check
          %p1877 = pneg %p350
        $region110: #{tpu_custom_call.1} parent=107 // pred_check_branch
          %1879 = sbr.rel (%p1877) target = $region112
        $region111: #{tpu_custom_call.1} parent=107 // pred_region
          %s1880 = sand.u32 %s335, 1
          %s1881 = scalar_lea.sflag [#allocation5], %s1880
          %s1882 = sand.u32 %s335, 1
          %s1883 = smul.addr %s1882, 8
          %s1884 = scalar_lea.vmem [#allocation15], %s1883
          %1885 = dma.done %s1881, 128
        $region112: #{tpu_custom_call.1} parent=107 // pred_fallthru
          _
      $region108: #{tpu_custom_call.1} parent=5 // pred_fallthru
        _
    $region6: #{tpu_custom_call.1} parent=1 // loop_footer
      %s32 = sadd.s32 1, %s28
    $region7: #{tpu_custom_call.1} parent=1 // loop_footer_branch
      %27 = sbr.rel target = $region3
    $region8: #{tpu_custom_call.1} parent=1 // loop_exit
      _
    %1886 = vsyncpa [#allocation4], 1
    %s1887 = scalar_lea.sflag [#allocation4], 1
    %1888 = vsyncpa %s1887, 1
    %1889 = vsyncpa [#allocation7], 1
    %s1890 = scalar_lea.sflag [#allocation7], 1
    %1891 = vsyncpa %s1890, 1
    %1892 = vsyncpa [#allocation10], 1
    %1893 = vsyncpa [#allocation13], 1
    %1894 = vsyncpa [#allocation5], 1
    %s1895 = scalar_lea.sflag [#allocation5], 1
    %1896 = vsyncpa %s1895, 1

</llo_original>
